<compile_context>
chip_gen: v7x
topology: tpu7x:2x2x1
jax: 0.10.0
libtpu: 0.0.40
codegen_flags: <defaults>
</compile_context>

<pallas_src>
import functools

import jax
import jax.numpy as jnp
from jax.experimental import pallas as pl
from jax.experimental.pallas import tpu as pltpu


def gatenu_kernel(x_ref, w1_ref, b1_ref, w2_ref, b2_ref, o_ref, *, gemma):
    # Cast x to the MXU input dtype in-kernel (VPU cast hidden under the matmul;
    # avoids a wrapper-side HBM read+write pass over x).
    x = x_ref[...].astype(w1_ref.dtype)
    # First linear (MXU, f32 accumulation) + bias + ReLU in f32.
    h = jnp.dot(x, w1_ref[...], preferred_element_type=jnp.float32)
    h = jnp.maximum(h + b1_ref[...], 0.0)                    # (tb, Hp) + (1, Hp)
    # Second linear: ReLU output downcast to the weight dtype for the MXU,
    # f32 accumulation (fine for a sigmoid gate).
    z = jnp.dot(h.astype(w2_ref.dtype), w2_ref[...],
                preferred_element_type=jnp.float32)
    z = z + b2_ref[...]                                      # (tb, Op) + (1, Op)
    # Sigmoid (EUP) * gemma in f32; single cast on the lane-dense store.
    o_ref[...] = (jax.nn.sigmoid(z) * gemma).astype(o_ref.dtype)


def _round_up(x, m):
    return ((x + m - 1) // m) * m


def _pad_to(arr, axis, new_size):
    pad = new_size - arr.shape[axis]
    if pad == 0:
        return arr
    widths = [(0, 0)] * arr.ndim
    widths[axis] = (0, pad)
    return jnp.pad(arr, widths)


def prepare_gatenu_params(w1, b1, w2, b2, *, use_bf16=True):
    """One-time parameter prep (hoisted out of the per-call hot path).

    w1: (D_in, H), b1: (H,), w2: (H, D_out), b2: (D_out,)  [torch weights, transposed]
    Pads H and D_out to multiples of 128 (zero padding is exact for this network)
    and casts weights to the MXU compute dtype; biases stay f32.
    """
    LANE = 128
    d_out = w2.shape[1]
    hp = _round_up(w1.shape[1], LANE)
    op = _round_up(d_out, LANE)
    cdt = jnp.bfloat16 if use_bf16 else jnp.float32
    return {
        "w1": _pad_to(w1, 1, hp).astype(cdt),                        # (D_in, Hp)
        "b1": _pad_to(b1.reshape(1, -1), 1, hp).astype(jnp.float32),  # (1, Hp)
        "w2": _pad_to(_pad_to(w2, 0, hp), 1, op).astype(cdt),         # (Hp, Op)
        "b2": _pad_to(b2.reshape(1, -1), 1, op).astype(jnp.float32),  # (1, Op)
        "d_out": int(d_out),
    }


def gate_nu_forward(x, params, *, gemma=2.0, max_tile_b=256):
    """x: (B, D_in) f32; params from prepare_gatenu_params()."""
    B, D_in = x.shape
    w1p, b1p = params["w1"], params["b1"]
    w2p, b2p = params["w2"], params["b2"]
    D_out = params["d_out"]
    assert w1p.shape[0] == D_in, "params were prepared for a different D_in"
    Hp = w1p.shape[1]
    Op = w2p.shape[1]

    # --- Batch tiling: divisor-aware, >=2 even grid steps when possible so the
    # "parallel" batch axis feeds both v7x TensorCores; tiles stay large
    # (single-TC v5e/v6e: few steps, low per-step overhead), batch padding is
    # bounded to a few sublane rows instead of a full fixed tile.
    Bp8 = _round_up(B, 8)
    steps = max(1, pl.cdiv(Bp8, max_tile_b))
    if Bp8 >= 16:
        steps = max(steps, 2)
    if steps > 1 and steps % 2 == 1:
        steps += 1                                  # even split across 2 TCs
    tile_b = _round_up(pl.cdiv(Bp8, steps), 8)
    grid_b = pl.cdiv(Bp8, tile_b)
    Bp = tile_b * grid_b
    xp = _pad_to(x, 0, Bp)                          # (Bp, D_in); D_in untouched

    # --- Explicit scoped-VMEM budget: double-buffered x/out tiles, weights and
    # biases (x2 also covers the double-buffered fallback), f32 intermediates,
    # plus slack.  Clamped to v7x's 64 MiB physical VMEM.
    need = (2 * tile_b * D_in * x.dtype.itemsize
            + 2 * tile_b * Op * x.dtype.itemsize
            + 2 * (w1p.size * w1p.dtype.itemsize + w2p.size * w2p.dtype.itemsize)
            + 2 * (b1p.size + b2p.size) * 4
            + 2 * tile_b * max(Hp, Op) * 4)
    vmem_limit = int(min(max(2 * need + (2 << 20), 16 << 20), 64 << 20))

    kernel = functools.partial(gatenu_kernel, gemma=float(gemma))
    out_shape = jax.ShapeDtypeStruct((Bp, Op), x.dtype)
    out_spec = pl.BlockSpec((tile_b, Op), lambda i: (i, 0))   # lane-dense store
    cparams = pltpu.CompilerParams(
        dimension_semantics=("parallel",),          # shard batch steps over TCs
        vmem_limit_bytes=vmem_limit)

    def run(single_buffer_weights):
        wkw = ({"pipeline_mode": pl.Buffered(1)} if single_buffer_weights else {})
        in_specs = [
            pl.BlockSpec((tile_b, D_in), lambda i: (i, 0)),       # x: streamed
            pl.BlockSpec((D_in, Hp), lambda i: (0, 0), **wkw),    # W1: resident
            pl.BlockSpec((1, Hp), lambda i: (0, 0), **wkw),       # b1
            pl.BlockSpec((Hp, Op), lambda i: (0, 0), **wkw),      # W2: resident
            pl.BlockSpec((1, Op), lambda i: (0, 0), **wkw),       # b2
        ]
        return pl.pallas_call(
            kernel,
            out_shape=out_shape,
            grid=(grid_b,),
            in_specs=in_specs,
            out_specs=out_spec,
            compiler_params=cparams,
        )(xp, w1p, b1p, w2p, b2p)

    try:
        # Constant-index weights never change between grid steps: single-buffer
        # them to halve their VMEM footprint.
        out_padded = run(single_buffer_weights=True)
    except Exception:
        # pipeline_mode unsupported in this JAX version: known-good default
        # double-buffered specs.
        out_padded = run(single_buffer_weights=False)

    if Bp == B and Op == D_out:
        return out_padded                           # exact already; no slice pass
    return out_padded[:B, :D_out]


def gate_nu_reference(x, w1, b1, w2, b2, gemma=2.0):
    h = jnp.maximum(x @ w1 + b1, 0.0)
    return jax.nn.sigmoid(h @ w2 + b2) * gemma


if __name__ == "__main__":
    # Small shapes consistent with GateNU(input_dim, output_dim, hidden_dim).
    # Non-multiple-of-128 feature dims exercise the H/D_out padding path;
    # B=256 splits into 2 even batch tiles (both v7x TensorCores active).
    B, D_in, H, D_out = 256, 48, 32, 24
    gemma = 2.0

    key = jax.random.PRNGKey(0)
    kx, kw1, kb1, kw2, kb2 = jax.random.split(key, 5)

    x = jax.random.normal(kx, (B, D_in), dtype=jnp.float32)
    # Deterministic synthetic parameters (nn.Linear-like scale), stored as
    # (in_features, out_features) == torch weight transposed.
    w1 = jax.random.normal(kw1, (D_in, H), dtype=jnp.float32) * (1.0 / jnp.sqrt(D_in))
    b1 = jax.random.normal(kb1, (H,), dtype=jnp.float32) * 0.01
    w2 = jax.random.normal(kw2, (H, D_out), dtype=jnp.float32) * (1.0 / jnp.sqrt(H))
    b2 = jax.random.normal(kb2, (D_out,), dtype=jnp.float32) * 0.01

    # One-time parameter prep (pad + bf16 cast) — not part of the per-call cost.
    params = prepare_gatenu_params(w1, b1, w2, b2, use_bf16=True)

    out = gate_nu_forward(x, params, gemma=gemma, max_tile_b=256)
    out = jax.block_until_ready(out)

    ref = gate_nu_reference(x, w1, b1, w2, b2, gemma=gemma)
    assert out.shape == (B, D_out)
    # bf16 MXU inputs with f32 accumulation: loose-but-tight-enough tolerance.
    assert jnp.allclose(out, ref, atol=1e-2, rtol=1e-2), "mismatch vs reference"

    print("KERNEL_OK")
</pallas_src>

<mosaic_0001>
module attributes {stable_mosaic.version = 11 : i64} {
  func.func @gatenu_kernel(%arg0: i32, %arg1: memref<128x48xf32, #tpu.memory_space<vmem>>, %arg2: memref<48x128xbf16, #tpu.memory_space<vmem>>, %arg3: memref<1x128xf32, #tpu.memory_space<vmem>>, %arg4: memref<128x128xbf16, #tpu.memory_space<vmem>>, %arg5: memref<1x128xf32, #tpu.memory_space<vmem>>, %arg6: memref<128x128xf32, #tpu.memory_space<vmem>>) attributes {dimension_semantics = [#tpu.dimension_semantics<parallel>], iteration_bounds = array<i64: 2>, scalar_prefetch = 0 : i64, scratch_operands = 0 : i64, tpu.core_type = #tpu.core_type<tc>, window_params = [{transform_indices = @transform_0, window_bounds = array<i64: 128, 48>}, {pipeline_mode = #tpu.pipeline_mode<synchronous>, transform_indices = @transform_1, window_bounds = array<i64: 48, 128>}, {pipeline_mode = #tpu.pipeline_mode<synchronous>, transform_indices = @transform_2, window_bounds = array<i64: 1, 128>}, {pipeline_mode = #tpu.pipeline_mode<synchronous>, transform_indices = @transform_3, window_bounds = array<i64: 128, 128>}, {pipeline_mode = #tpu.pipeline_mode<synchronous>, transform_indices = @transform_4, window_bounds = array<i64: 1, 128>}, {transform_indices = @transform_5, window_bounds = array<i64: 128, 128>}]} {
    %c0 = arith.constant 0 : index
    %c0_0 = arith.constant 0 : index
    %0 = vector.load %arg1[%c0, %c0_0] : memref<128x48xf32, #tpu.memory_space<vmem>>, vector<128x48xf32>
    %1 = arith.truncf %0 : vector<128x48xf32> to vector<128x48xbf16>
    %c0_1 = arith.constant 0 : index
    %c0_2 = arith.constant 0 : index
    %2 = vector.load %arg2[%c0_1, %c0_2] : memref<48x128xbf16, #tpu.memory_space<vmem>>, vector<48x128xbf16>
    %cst = arith.constant dense<0.000000e+00> : vector<128x128xf32>
    %3 = tpu.matmul %1, %2, %cst {dimension_numbers = #tpu.dot_dimension_numbers<[1], [0], [0], [1], [0, 0, 1, 1], [], []>} : vector<128x48xbf16>, vector<48x128xbf16>, vector<128x128xf32> -> vector<128x128xf32>
    %c0_3 = arith.constant 0 : index
    %c0_4 = arith.constant 0 : index
    %4 = vector.load %arg3[%c0_3, %c0_4] : memref<1x128xf32, #tpu.memory_space<vmem>>, vector<1x128xf32>
    %5 = vector.broadcast %4 : vector<1x128xf32> to vector<128x128xf32>
    %6 = arith.addf %3, %5 : vector<128x128xf32>
    %cst_5 = arith.constant 0.000000e+00 : f32
    %7 = vector.broadcast %cst_5 : f32 to vector<128x128xf32>
    %8 = arith.maximumf %6, %7 : vector<128x128xf32>
    %9 = arith.truncf %8 : vector<128x128xf32> to vector<128x128xbf16>
    %c0_6 = arith.constant 0 : index
    %c0_7 = arith.constant 0 : index
    %10 = vector.load %arg4[%c0_6, %c0_7] : memref<128x128xbf16, #tpu.memory_space<vmem>>, vector<128x128xbf16>
    %cst_8 = arith.constant dense<0.000000e+00> : vector<128x128xf32>
    %11 = tpu.matmul %9, %10, %cst_8 {dimension_numbers = #tpu.dot_dimension_numbers<[1], [0], [0], [1], [0, 0, 1, 1], [], []>} : vector<128x128xbf16>, vector<128x128xbf16>, vector<128x128xf32> -> vector<128x128xf32>
    %c0_9 = arith.constant 0 : index
    %c0_10 = arith.constant 0 : index
    %12 = vector.load %arg5[%c0_9, %c0_10] : memref<1x128xf32, #tpu.memory_space<vmem>>, vector<1x128xf32>
    %13 = vector.broadcast %12 : vector<1x128xf32> to vector<128x128xf32>
    %14 = arith.addf %11, %13 : vector<128x128xf32>
    %15 = arith.negf %14 : vector<128x128xf32>
    %16 = math.exp %15 : vector<128x128xf32>
    %cst_11 = arith.constant 1.000000e+00 : f32
    %17 = vector.broadcast %cst_11 : f32 to vector<128x128xf32>
    %18 = arith.addf %17, %16 : vector<128x128xf32>
    %19 = arith.divf %17, %18 : vector<128x128xf32>
    %cst_12 = arith.constant 2.000000e+00 : f32
    %20 = vector.broadcast %cst_12 : f32 to vector<128x128xf32>
    %21 = arith.mulf %19, %20 : vector<128x128xf32>
    %c0_13 = arith.constant 0 : index
    %c0_14 = arith.constant 0 : index
    %22 = vector.load %arg6[%c0_13, %c0_14] : memref<128x128xf32, #tpu.memory_space<vmem>>, vector<128x128xf32>
    tpu.vector_store %arg6[%c0_13, %c0_14], %21 {strides = array<i32>} : memref<128x128xf32, #tpu.memory_space<vmem>>, vector<128x128xf32>,
    return
  }
  func.func @transform_0(%arg0: i32) -> (i32, i32) {
    %c0_i32 = arith.constant 0 : i32
    %c0_i32_0 = arith.constant 0 : i32
    return %arg0, %c0_i32 : i32, i32
  }
  func.func @transform_1(%arg0: i32) -> (i32, i32) {
    %c0_i32 = arith.constant 0 : i32
    %c0_i32_0 = arith.constant 0 : i32
    %c0_i32_1 = arith.constant 0 : i32
    return %c0_i32, %c0_i32_0 : i32, i32
  }
  func.func @transform_2(%arg0: i32) -> (i32, i32) {
    %c0_i32 = arith.constant 0 : i32
    %c0_i32_0 = arith.constant 0 : i32
    %c0_i32_1 = arith.constant 0 : i32
    return %c0_i32, %c0_i32_0 : i32, i32
  }
  func.func @transform_3(%arg0: i32) -> (i32, i32) {
    %c0_i32 = arith.constant 0 : i32
    %c0_i32_0 = arith.constant 0 : i32
    %c0_i32_1 = arith.constant 0 : i32
    return %c0_i32, %c0_i32_0 : i32, i32
  }
  func.func @transform_4(%arg0: i32) -> (i32, i32) {
    %c0_i32 = arith.constant 0 : i32
    %c0_i32_0 = arith.constant 0 : i32
    %c0_i32_1 = arith.constant 0 : i32
    return %c0_i32, %c0_i32_0 : i32, i32
  }
  func.func @transform_5(%arg0: i32) -> (i32, i32) {
    %c0_i32 = arith.constant 0 : i32
    %c0_i32_0 = arith.constant 0 : i32
    return %arg0, %c0_i32 : i32, i32
  }
}

module attributes {stable_mosaic.version = 11 : i64} {
  func.func @gatenu_kernel(%arg0: i32, %arg1: memref<128x48xf32, #tpu.memory_space<vmem>>, %arg2: memref<48x128xbf16, #tpu.memory_space<vmem>>, %arg3: memref<1x128xf32, #tpu.memory_space<vmem>>, %arg4: memref<128x128xbf16, #tpu.memory_space<vmem>>, %arg5: memref<1x128xf32, #tpu.memory_space<vmem>>, %arg6: memref<128x128xf32, #tpu.memory_space<vmem>>) attributes {dimension_semantics = [#tpu.dimension_semantics<parallel>], iteration_bounds = array<i64: 2>, scalar_prefetch = 0 : i64, scratch_operands = 0 : i64, tpu.core_type = #tpu.core_type<tc>, window_params = [{transform_indices = @transform_0, window_bounds = array<i64: 128, 48>}, {pipeline_mode = #tpu.pipeline_mode<synchronous>, transform_indices = @transform_1, window_bounds = array<i64: 48, 128>}, {pipeline_mode = #tpu.pipeline_mode<synchronous>, transform_indices = @transform_2, window_bounds = array<i64: 1, 128>}, {pipeline_mode = #tpu.pipeline_mode<synchronous>, transform_indices = @transform_3, window_bounds = array<i64: 128, 128>}, {pipeline_mode = #tpu.pipeline_mode<synchronous>, transform_indices = @transform_4, window_bounds = array<i64: 1, 128>}, {transform_indices = @transform_5, window_bounds = array<i64: 128, 128>}]} {
    %c0 = arith.constant 0 : index
    %c0_0 = arith.constant 0 : index
    %0 = vector.load %arg1[%c0, %c0_0] : memref<128x48xf32, #tpu.memory_space<vmem>>, vector<128x48xf32>
    %1 = arith.truncf %0 : vector<128x48xf32> to vector<128x48xbf16>
    %c0_1 = arith.constant 0 : index
    %c0_2 = arith.constant 0 : index
    %2 = vector.load %arg2[%c0_1, %c0_2] : memref<48x128xbf16, #tpu.memory_space<vmem>>, vector<48x128xbf16>
    %cst = arith.constant dense<0.000000e+00> : vector<128x128xf32>
    %3 = tpu.matmul %1, %2, %cst {dimension_numbers = #tpu.dot_dimension_numbers<[1], [0], [0], [1], [0, 0, 1, 1], [], []>} : vector<128x48xbf16>, vector<48x128xbf16>, vector<128x128xf32> -> vector<128x128xf32>
    %c0_3 = arith.constant 0 : index
    %c0_4 = arith.constant 0 : index
    %4 = vector.load %arg3[%c0_3, %c0_4] : memref<1x128xf32, #tpu.memory_space<vmem>>, vector<1x128xf32>
    %5 = vector.broadcast %4 : vector<1x128xf32> to vector<128x128xf32>
    %6 = arith.addf %3, %5 : vector<128x128xf32>
    %cst_5 = arith.constant 0.000000e+00 : f32
    %7 = vector.broadcast %cst_5 : f32 to vector<128x128xf32>
    %8 = arith.maximumf %6, %7 : vector<128x128xf32>
    %9 = arith.truncf %8 : vector<128x128xf32> to vector<128x128xbf16>
    %c0_6 = arith.constant 0 : index
    %c0_7 = arith.constant 0 : index
    %10 = vector.load %arg4[%c0_6, %c0_7] : memref<128x128xbf16, #tpu.memory_space<vmem>>, vector<128x128xbf16>
    %cst_8 = arith.constant dense<0.000000e+00> : vector<128x128xf32>
    %11 = tpu.matmul %9, %10, %cst_8 {dimension_numbers = #tpu.dot_dimension_numbers<[1], [0], [0], [1], [0, 0, 1, 1], [], []>} : vector<128x128xbf16>, vector<128x128xbf16>, vector<128x128xf32> -> vector<128x128xf32>
    %c0_9 = arith.constant 0 : index
    %c0_10 = arith.constant 0 : index
    %12 = vector.load %arg5[%c0_9, %c0_10] : memref<1x128xf32, #tpu.memory_space<vmem>>, vector<1x128xf32>
    %13 = vector.broadcast %12 : vector<1x128xf32> to vector<128x128xf32>
    %14 = arith.addf %11, %13 : vector<128x128xf32>
    %15 = arith.negf %14 : vector<128x128xf32>
    %16 = math.exp %15 : vector<128x128xf32>
    %cst_11 = arith.constant 1.000000e+00 : f32
    %17 = vector.broadcast %cst_11 : f32 to vector<128x128xf32>
    %18 = arith.addf %17, %16 : vector<128x128xf32>
    %19 = arith.divf %17, %18 : vector<128x128xf32>
    %cst_12 = arith.constant 2.000000e+00 : f32
    %20 = vector.broadcast %cst_12 : f32 to vector<128x128xf32>
    %21 = arith.mulf %19, %20 : vector<128x128xf32>
    %c0_13 = arith.constant 0 : index
    %c0_14 = arith.constant 0 : index
    %22 = vector.load %arg6[%c0_13, %c0_14] : memref<128x128xf32, #tpu.memory_space<vmem>>, vector<128x128xf32>
    tpu.vector_store %arg6[%c0_13, %c0_14], %21 {strides = array<i32>} : memref<128x128xf32, #tpu.memory_space<vmem>>, vector<128x128xf32>,
    return
  }
  func.func @transform_0(%arg0: i32) -> (i32, i32) {
    %c0_i32 = arith.constant 0 : i32
    %c0_i32_0 = arith.constant 0 : i32
    return %arg0, %c0_i32 : i32, i32
  }
  func.func @transform_1(%arg0: i32) -> (i32, i32) {
    %c0_i32 = arith.constant 0 : i32
    %c0_i32_0 = arith.constant 0 : i32
    %c0_i32_1 = arith.constant 0 : i32
    return %c0_i32, %c0_i32_0 : i32, i32
  }
  func.func @transform_2(%arg0: i32) -> (i32, i32) {
    %c0_i32 = arith.constant 0 : i32
    %c0_i32_0 = arith.constant 0 : i32
    %c0_i32_1 = arith.constant 0 : i32
    return %c0_i32, %c0_i32_0 : i32, i32
  }
  func.func @transform_3(%arg0: i32) -> (i32, i32) {
    %c0_i32 = arith.constant 0 : i32
    %c0_i32_0 = arith.constant 0 : i32
    %c0_i32_1 = arith.constant 0 : i32
    return %c0_i32, %c0_i32_0 : i32, i32
  }
  func.func @transform_4(%arg0: i32) -> (i32, i32) {
    %c0_i32 = arith.constant 0 : i32
    %c0_i32_0 = arith.constant 0 : i32
    %c0_i32_1 = arith.constant 0 : i32
    return %c0_i32, %c0_i32_0 : i32, i32
  }
  func.func @transform_5(%arg0: i32) -> (i32, i32) {
    %c0_i32 = arith.constant 0 : i32
    %c0_i32_0 = arith.constant 0 : i32
    return %arg0, %c0_i32 : i32, i32
  }
}

</mosaic_0001>

<llo_original>
// kernel: tpu_custom_call.1
$region0: #{tpu_custom_call.1}
  #allocation0 [shape = 'u32[]', space=smem, size = 0x4, offset = 0x4, fixed_abs, tag = 'smem constant byte address 0x4 - core index']
  #allocation1 [shape = 'u32[144,128]{1,0:T(1,128)}', space=vmem, size = 0x12000, scoped, tag = 'internal scratch']
  %s0 = inlined_call_operand.vmem [shape: f32[256,48], index: 0, kind: input, shape index: {}]
  %s1 = inlined_call_operand.vmem [shape: bf16[48,128], index: 1, kind: input, shape index: {}]
  %s2 = inlined_call_operand.vmem [shape: f32[1,128], index: 2, kind: input, shape index: {}]
  %s3 = inlined_call_operand.vmem [shape: bf16[128,128], index: 3, kind: input, shape index: {}]
  %s4 = inlined_call_operand.vmem [shape: f32[1,128], index: 4, kind: input, shape index: {}]
  %s5 = inlined_call_operand.hbm [shape: f32[256,128], index: 5, kind: output, shape index: {}]
  %s6 = sld [smem:[#allocation0]]
  $region53: #{tpu_custom_call.1} parent=0
    _
  %s8 = ssub.s32 1, %s6
  %s9 = scalar_select 0, %s8, %s6
  $region1: #{tpu_custom_call.1} parent=0
    #allocation2 [shape = 'u8[131072]{0}', space=vmem, size = 0x20000, scoped, tag = 'output window, operand 0']
    #allocation3 [shape = 's32[2]{0}', space=sflag, size = 0x8, scoped, tag = 'scoped memory for tpu_custom_call.1']
    %10 = vsyncpa [#allocation3], 0
    %s11 = scalar_lea.sflag [#allocation3], 1
    %12 = vsyncpa %s11, 0
    loop: start=0, step=1, limit=4
    $region2: #{tpu_custom_call.1} parent=1 // loop_pre_header
      _
    $region3: #{tpu_custom_call.1} parent=1 // loop_header
      %s14 = sphi 0, %s18
      %p15 = scmp.ge.s32.totalorder %s14, 4
      %s24 = sphi 0, %s26
      %s27 = sphi 0, %s24
      %s28 = sphi 0, %s27
      %s44 = sphi 0, %s28
      %s48 = sphi 0, %s48
      %s50 = sphi 0, %s48
      %s51 = sphi 0, %s50
      %s65 = sphi 0, %s51
      %s69 = sphi 0, %s69
      %s71 = sphi 0, %s69
      %s72 = sphi 0, %s71
      %s86 = sphi 0, %s72
      %s90 = sphi 0, %s90
      %s92 = sphi 0, %s90
      %s93 = sphi 0, %s92
      %s107 = sphi 0, %s93
      %s111 = sphi 0, %s111
      %s113 = sphi 0, %s111
      %s114 = sphi 0, %s113
      %s128 = sphi 0, %s114
      %s134 = sphi 0, %s136
      %s137 = sphi 0, %s134
      %s138 = sphi 0, %s137
      %s154 = sphi 0, %s138
    $region4: #{tpu_custom_call.1} parent=1 // loop_header_branch
      %17 = sbr.rel (%p15) target = $region8
    $region5: #{tpu_custom_call.1} parent=1 // loop_body
      %s19 = ssub.s32 %s14, 1
      %s20 = ssub.s32 %s14, 2
      %s21 = sadd.s32 %s14, 1
      %s22 = ssub.s32 %s14, %s21
      %p23 = scmp.eq.s32.totalorder %s22, 0
      %s25 = sadd.s32 %s24, 1
      %s26 = scalar_select %p23, %s24, %s25
      %p29 = pneg %p23
      %p30 = scmp.eq.s32.totalorder %s14, 1
      %p31 = por %p29, %p30
      %p32 = scmp.ne.s32.totalorder %s24, %s27
      %p33 = scmp.eq.s32.totalorder %s14, 0
      %p34 = por %p32, %p33
      %p35 = scmp.ne.s32.totalorder %s24, %s27
      %p36 = scmp.eq.s32.totalorder %s19, 1
      %p37 = por %p35, %p36
      %p38 = scmp.ne.s32.totalorder %s27, %s28
      %p39 = scmp.eq.s32.totalorder %s19, 0
      %p40 = por %p38, %p39
      %p41 = scmp.ne.s32.totalorder %s27, %s28
      %p42 = scmp.eq.s32.totalorder %s20, 1
      %p43 = por %p41, %p42
      %p45 = scmp.ne.s32.totalorder %s28, %s44
      %p46 = scmp.eq.s32.totalorder %s20, 0
      %p47 = por %p45, %p46
      %s49 = sadd.s32 %s48, 1
      %p52 = scmp.eq.s32.totalorder %s14, 1
      %p53 = scmp.ne.s32.totalorder %s48, %s50
      %p54 = scmp.eq.s32.totalorder %s14, 0
      %p55 = por %p53, %p54
      %p56 = scmp.ne.s32.totalorder %s48, %s50
      %p57 = scmp.eq.s32.totalorder %s19, 1
      %p58 = por %p56, %p57
      %p59 = scmp.ne.s32.totalorder %s50, %s51
      %p60 = scmp.eq.s32.totalorder %s19, 0
      %p61 = por %p59, %p60
      %p62 = scmp.ne.s32.totalorder %s50, %s51
      %p63 = scmp.eq.s32.totalorder %s20, 1
      %p64 = por %p62, %p63
      %p66 = scmp.ne.s32.totalorder %s51, %s65
      %p67 = scmp.eq.s32.totalorder %s20, 0
      %p68 = por %p66, %p67
      %s70 = sadd.s32 %s69, 1
      %p73 = scmp.eq.s32.totalorder %s14, 1
      %p74 = scmp.ne.s32.totalorder %s69, %s71
      %p75 = scmp.eq.s32.totalorder %s14, 0
      %p76 = por %p74, %p75
      %p77 = scmp.ne.s32.totalorder %s69, %s71
      %p78 = scmp.eq.s32.totalorder %s19, 1
      %p79 = por %p77, %p78
      %p80 = scmp.ne.s32.totalorder %s71, %s72
      %p81 = scmp.eq.s32.totalorder %s19, 0
      %p82 = por %p80, %p81
      %p83 = scmp.ne.s32.totalorder %s71, %s72
      %p84 = scmp.eq.s32.totalorder %s20, 1
      %p85 = por %p83, %p84
      %p87 = scmp.ne.s32.totalorder %s72, %s86
      %p88 = scmp.eq.s32.totalorder %s20, 0
      %p89 = por %p87, %p88
      %s91 = sadd.s32 %s90, 1
      %p94 = scmp.eq.s32.totalorder %s14, 1
      %p95 = scmp.ne.s32.totalorder %s90, %s92
      %p96 = scmp.eq.s32.totalorder %s14, 0
      %p97 = por %p95, %p96
      %p98 = scmp.ne.s32.totalorder %s90, %s92
      %p99 = scmp.eq.s32.totalorder %s19, 1
      %p100 = por %p98, %p99
      %p101 = scmp.ne.s32.totalorder %s92, %s93
      %p102 = scmp.eq.s32.totalorder %s19, 0
      %p103 = por %p101, %p102
      %p104 = scmp.ne.s32.totalorder %s92, %s93
      %p105 = scmp.eq.s32.totalorder %s20, 1
      %p106 = por %p104, %p105
      %p108 = scmp.ne.s32.totalorder %s93, %s107
      %p109 = scmp.eq.s32.totalorder %s20, 0
      %p110 = por %p108, %p109
      %s112 = sadd.s32 %s111, 1
      %p115 = scmp.eq.s32.totalorder %s14, 1
      %p116 = scmp.ne.s32.totalorder %s111, %s113
      %p117 = scmp.eq.s32.totalorder %s14, 0
      %p118 = por %p116, %p117
      %p119 = scmp.ne.s32.totalorder %s111, %s113
      %p120 = scmp.eq.s32.totalorder %s19, 1
      %p121 = por %p119, %p120
      %p122 = scmp.ne.s32.totalorder %s113, %s114
      %p123 = scmp.eq.s32.totalorder %s19, 0
      %p124 = por %p122, %p123
      %p125 = scmp.ne.s32.totalorder %s113, %s114
      %p126 = scmp.eq.s32.totalorder %s20, 1
      %p127 = por %p125, %p126
      %p129 = scmp.ne.s32.totalorder %s114, %s128
      %p130 = scmp.eq.s32.totalorder %s20, 0
      %p131 = por %p129, %p130
      %s132 = ssub.s32 %s14, %s21
      %p133 = scmp.eq.s32.totalorder %s132, 0
      %s135 = sadd.s32 %s134, 1
      %s136 = scalar_select %p133, %s134, %s135
      %p139 = pneg %p133
      %p140 = scmp.eq.s32.totalorder %s14, 1
      %p141 = por %p139, %p140
      %p142 = scmp.ne.s32.totalorder %s134, %s137
      %p143 = scmp.eq.s32.totalorder %s14, 0
      %p144 = por %p142, %p143
      %p145 = scmp.ne.s32.totalorder %s134, %s137
      %p146 = scmp.eq.s32.totalorder %s19, 1
      %p147 = por %p145, %p146
      %p148 = scmp.ne.s32.totalorder %s137, %s138
      %p149 = scmp.eq.s32.totalorder %s19, 0
      %p150 = por %p148, %p149
      %p151 = scmp.ne.s32.totalorder %s137, %s138
      %p152 = scmp.eq.s32.totalorder %s20, 1
      %p153 = por %p151, %p152
      %p155 = scmp.ne.s32.totalorder %s138, %s154
      %p156 = scmp.eq.s32.totalorder %s20, 0
      %p157 = por %p155, %p156
      %p158 = scmp.le.s32.totalorder 1, %s14
      %p159 = scmp.lt.s32.totalorder %s14, 3
      %p160 = pnand %p158, %p159
      %p161 = pneg %p160
      // Predicated region
      $region9: #{tpu_custom_call.1} parent=5 // pred_check
        _
      $region10: #{tpu_custom_call.1} parent=5 // pred_check_branch
        %163 = sbr.rel (%p160) target = $region12
      $region11: #{tpu_custom_call.1} parent=5 // pred_region
        %s164 = ssub.s32 %s14, 1
        // Predicated region
        $region13: #{tpu_custom_call.1} parent=11 // pred_check
          %p165 = pneg %p61
        $region14: #{tpu_custom_call.1} parent=11 // pred_check_branch
          %167 = sbr.rel (%p165) target = $region16
        $region15: #{tpu_custom_call.1} parent=11 // pred_region
          _
        $region16: #{tpu_custom_call.1} parent=11 // pred_fallthru
          _
        // Predicated region
        $region17: #{tpu_custom_call.1} parent=11 // pred_check
          %p168 = pneg %p82
        $region18: #{tpu_custom_call.1} parent=11 // pred_check_branch
          %170 = sbr.rel (%p168) target = $region20
        $region19: #{tpu_custom_call.1} parent=11 // pred_region
          _
        $region20: #{tpu_custom_call.1} parent=11 // pred_fallthru
          _
        // Predicated region
        $region21: #{tpu_custom_call.1} parent=11 // pred_check
          %p171 = pneg %p103
        $region22: #{tpu_custom_call.1} parent=11 // pred_check_branch
          %173 = sbr.rel (%p171) target = $region24
        $region23: #{tpu_custom_call.1} parent=11 // pred_region
          _
        $region24: #{tpu_custom_call.1} parent=11 // pred_fallthru
          _
        // Predicated region
        $region25: #{tpu_custom_call.1} parent=11 // pred_check
          %p174 = pneg %p124
        $region26: #{tpu_custom_call.1} parent=11 // pred_check_branch
          %176 = sbr.rel (%p174) target = $region28
        $region27: #{tpu_custom_call.1} parent=11 // pred_region
          _
        $region28: #{tpu_custom_call.1} parent=11 // pred_fallthru
          _
      $region12: #{tpu_custom_call.1} parent=5 // pred_fallthru
        _
      %p177 = scmp.lt.s32.totalorder %s14, 2
      // Predicated region
      $region29: #{tpu_custom_call.1} parent=5 // pred_check
        %p178 = pneg %p177
      $region30: #{tpu_custom_call.1} parent=5 // pred_check_branch
        %180 = sbr.rel (%p178) target = $region32
      $region31: #{tpu_custom_call.1} parent=5 // pred_region
        // Predicated region
        $region33: #{tpu_custom_call.1} parent=31 // pred_check
          %p181 = pneg %p34
        $region34: #{tpu_custom_call.1} parent=31 // pred_check_branch
          %183 = sbr.rel (%p181) target = $region36
        $region35: #{tpu_custom_call.1} parent=31 // pred_region
          %s184 = smul.u32 16, %s14
          %p185 = scmp.lt.s32.totalorder %s184, 31
          %s186 = scalar_select %p185, %s184, 31
          %s187 = smul.addr %s186, 8
          %s188 = scalar_lea.vmem %s0, %s187
          %s189 = smul.u32 16, %s14
        $region36: #{tpu_custom_call.1} parent=31 // pred_fallthru
          _
      $region32: #{tpu_custom_call.1} parent=5 // pred_fallthru
        _
      %p190 = scmp.le.s32.totalorder 1, %s14
      %p191 = scmp.lt.s32.totalorder %s14, 3
      %p192 = pnand %p190, %p191
      %p193 = pneg %p192
      // Predicated region
      $region37: #{tpu_custom_call.1} parent=5 // pred_check
        _
      $region38: #{tpu_custom_call.1} parent=5 // pred_check_branch
        %195 = sbr.rel (%p192) target = $region40
      $region39: #{tpu_custom_call.1} parent=5 // pred_region
        %s196 = ssub.s32 %s14, 1
        %s197 = smul.u32 16, %s19
        %p198 = scmp.lt.s32.totalorder %s197, 31
        %s199 = scalar_select %p198, %s197, 31
        %s200 = smul.addr %s199, 8
        %s201 = scalar_lea.vmem %s0, %s200
        %p202 = pneg %p40
        %p203 = pneg %p37
        %p204 = pneg %p61
        %p205 = pneg %p58
        %p206 = pneg %p82
        %p207 = pneg %p79
        %p208 = pneg %p103
        %p209 = pneg %p100
        %p210 = pneg %p124
        %p211 = pneg %p121
        %p212 = pneg %p150
        %p213 = pneg %p147
        %s214 = sand.u32 %s137, 1
        %s215 = scalar_lea.sflag [#allocation3], %s214
        %s216 = sand.u32 %s137, 1
        %s217 = smul.addr %s216, 128
        %s218 = scalar_lea.vmem [#allocation2], %s217
        %s219 = smul.u32 16, %s19
        %p220 = scmp.lt.s32.totalorder %s219, 31
        %s221 = scalar_select %p220, %s219, 31
        %s222 = smul.addr %s221, 8
        %s223 = scalar_lea.vmem %s0, %s222
        %s224 = smul.u32 16, %s19
        %s225 = smul.u32 16, %s19
        %v227 = vld [vmem:[%s223] sm:$0xff]
        %v228 = vld [vmem:[%s223 + $0x8] sm:$0xff]
        %v229 = vld [vmem:[%s223 + $0x10] sm:$0xff]
        %v230 = vld [vmem:[%s223 + $0x18] sm:$0xff]
        %v231 = vld [vmem:[%s223 + $0x20] sm:$0xff]
        %v232 = vld [vmem:[%s223 + $0x28] sm:$0xff]
        %v233 = vld [vmem:[%s223 + $0x30] sm:$0xff]
        %v234 = vld [vmem:[%s223 + $0x38] sm:$0xff]
        %v235 = vld [vmem:[%s223 + $0x40] sm:$0xff]
        %v236 = vld [vmem:[%s223 + $0x48] sm:$0xff]
        %v237 = vld [vmem:[%s223 + $0x50] sm:$0xff]
        %v238 = vld [vmem:[%s223 + $0x58] sm:$0xff]
        %v239 = vld [vmem:[%s223 + $0x60] sm:$0xff]
        %v240 = vld [vmem:[%s223 + $0x68] sm:$0xff]
        %v241 = vld [vmem:[%s223 + $0x70] sm:$0xff]
        %v242 = vld [vmem:[%s223 + $0x78] sm:$0xff]
        %v243 = vpack.c.bf16 %v228, %v227
        %v244 = vpack.c.bf16 %v230, %v229
        %v245 = vpack.c.bf16 %v232, %v231
        %v246 = vpack.c.bf16 %v234, %v233
        %v247 = vpack.c.bf16 %v236, %v235
        %v248 = vpack.c.bf16 %v238, %v237
        %v249 = vpack.c.bf16 %v240, %v239
        %v250 = vpack.c.bf16 %v242, %v241
        %v251 = vld [vmem:[%s1] sm:$0xf]
        %v252 = vld [vmem:[%s1 + $0x4] sm:$0xf]
        %v253 = vld [vmem:[%s1 + $0x8] sm:$0xf]
        %v254 = vld [vmem:[%s1 + $0xc] sm:$0xf]
        %v255 = vld [vmem:[%s1 + $0x10] sm:$0xf]
        %v256 = vld [vmem:[%s1 + $0x14] sm:$0xf]
        %v257 = vld [vmem:[%s2] sm:$0x1]
        %v259 = vlaneseq
        %v260 = vshrl.u32 %v259, 7
        %v261 = vsub.s32 0, %v260
        %v262 = vrot.slane %v257, %v261
        %v270 = vunpack.c.l.b16 %v251
        %v271 = vunpack.c.l.b16 %v252
        %v272 = vunpack.c.l.b16 %v253
        %v273 = vunpack.c.l.b16 %v254
        %v274 = vunpack.c.l.b16 %v255
        %v275 = vunpack.c.l.b16 %v256
        %v276 = vpack.c.b16 %v271, %v270
        %v277 = vpack.c.b16 %v273, %v272
        %v278 = vpack.c.b16 %v275, %v274
        %vm282 = vcmask 392192
        %v284 = vsel %vm282, %v243, 0
        %v287 = vsel %vm282, %v244, 0
        %v290 = vsel %vm282, %v245, 0
        %v293 = vsel %vm282, %v246, 0
        %v296 = vsel %vm282, %v247, 0
        %v299 = vsel %vm282, %v248, 0
        %v302 = vsel %vm282, %v249, 0
        %v305 = vsel %vm282, %v250, 0
        %307 = vmatprep.subr.bf16.mxu0 0
        %308 = vmatpush1.bf16.msra.mxu0 %v276
        %309 = vmatprep.subr.bf16.mxu0 0
        %310 = vmatpush1.bf16.msra.mxu0 %v277
        %311 = vmatprep.subr.bf16.mxu0 0
        %312 = vmatpush1.bf16.msra.mxu0 %v278
        %313 = vmatprep.subr.bf16.mxu0 0
        %314 = vmatpush1.bf16.msra.mxu0 0
        %315 = vmatprep.subr.bf16.mxu0 0
        %316 = vmatpush1.bf16.msra.mxu0 0
        %317 = vmatprep.subr.bf16.mxu0 0
        %318 = vmatpush1.bf16.msra.mxu0 0
        %319 = vmatprep.subr.bf16.mxu0 0
        %320 = vmatpush1.bf16.msra.mxu0 0
        %321 = vmatprep.subr.bf16.mxu0 0
        %322 = vmatpush1.bf16.msra.mxu0 0
        %323 = vmatprep.subr.bf16.mxu0 0
        %324 = vmatpush1.bf16.msra.mxu0 0
        %325 = vmatprep.subr.bf16.mxu0 0
        %326 = vmatpush1.bf16.msra.mxu0 0
        %327 = vmatprep.subr.bf16.mxu0 0
        %328 = vmatpush1.bf16.msra.mxu0 0
        %329 = vmatprep.subr.bf16.mxu0 0
        %330 = vmatpush1.bf16.msra.mxu0 0
        %331 = vmatprep.subr.bf16.mxu0 0
        %332 = vmatpush1.bf16.msra.mxu0 0
        %333 = vmatprep.subr.bf16.mxu0 0
        %334 = vmatpush1.bf16.msra.mxu0 0
        %335 = vmatprep.subr.bf16.mxu0 0
        %336 = vmatpush1.bf16.msra.mxu0 0
        %337 = vmatprep.subr.bf16.mxu0 0
        %338 = vmatpush1.bf16.msra.mxu0 0
        %339 = vmatprep.mubr.bf16.mxu0 0
        %340 = vmatmul.mubr.bf16.gmra.mrb[0].mxu0 %v284
        %v341 = vpop.f32.mrb[0].mxu0
        %v342 = vadd.f32 %v262, %v341
        %v343 = vpop.f32.mrb[0].mxu0
        %v344 = vpop.f32.mrb[0].mxu0
        %v345 = vadd.f32 %v262, %v344
        %v346 = vpop.f32.mrb[0].mxu0
        %347 = vmatprep.mubr.bf16.mxu0 0
        %348 = vmatmul.mubr.bf16.gmra.mrb[0].mxu0 %v287
        %v349 = vpop.f32.mrb[0].mxu0
        %v350 = vadd.f32 %v262, %v349
        %v351 = vpop.f32.mrb[0].mxu0
        %v352 = vpop.f32.mrb[0].mxu0
        %v353 = vadd.f32 %v262, %v352
        %v354 = vpop.f32.mrb[0].mxu0
        %355 = vmatprep.mubr.bf16.mxu0 0
        %356 = vmatmul.mubr.bf16.gmra.mrb[0].mxu0 %v290
        %v357 = vpop.f32.mrb[0].mxu0
        %v358 = vadd.f32 %v262, %v357
        %v359 = vpop.f32.mrb[0].mxu0
        %v360 = vpop.f32.mrb[0].mxu0
        %v361 = vadd.f32 %v262, %v360
        %v362 = vpop.f32.mrb[0].mxu0
        %363 = vmatprep.mubr.bf16.mxu0 0
        %364 = vmatmul.mubr.bf16.gmra.mrb[0].mxu0 %v293
        %v365 = vpop.f32.mrb[0].mxu0
        %v366 = vadd.f32 %v262, %v365
        %v367 = vpop.f32.mrb[0].mxu0
        %v368 = vpop.f32.mrb[0].mxu0
        %v369 = vadd.f32 %v262, %v368
        %v370 = vpop.f32.mrb[0].mxu0
        %371 = vmatprep.mubr.bf16.mxu0 0
        %372 = vmatmul.mubr.bf16.gmra.mrb[0].mxu0 %v296
        %v373 = vpop.f32.mrb[0].mxu0
        %v374 = vadd.f32 %v262, %v373
        %v375 = vpop.f32.mrb[0].mxu0
        %v376 = vpop.f32.mrb[0].mxu0
        %v377 = vadd.f32 %v262, %v376
        %v378 = vpop.f32.mrb[0].mxu0
        %379 = vmatprep.mubr.bf16.mxu0 0
        %380 = vmatmul.mubr.bf16.gmra.mrb[0].mxu0 %v299
        %v381 = vpop.f32.mrb[0].mxu0
        %v382 = vadd.f32 %v262, %v381
        %v383 = vpop.f32.mrb[0].mxu0
        %v384 = vpop.f32.mrb[0].mxu0
        %v385 = vadd.f32 %v262, %v384
        %v386 = vpop.f32.mrb[0].mxu0
        %387 = vmatprep.mubr.bf16.mxu0 0
        %388 = vmatmul.mubr.bf16.gmra.mrb[0].mxu0 %v302
        %v389 = vpop.f32.mrb[0].mxu0
        %v390 = vadd.f32 %v262, %v389
        %v391 = vpop.f32.mrb[0].mxu0
        %v392 = vpop.f32.mrb[0].mxu0
        %v393 = vadd.f32 %v262, %v392
        %v394 = vpop.f32.mrb[0].mxu0
        %395 = vmatprep.mubr.bf16.mxu0 0
        %396 = vmatmul.mubr.bf16.gmra.mrb[0].mxu0 %v305
        %v397 = vpop.f32.mrb[0].mxu0
        %v398 = vadd.f32 %v262, %v397
        %v399 = vpop.f32.mrb[0].mxu0
        %v400 = vpop.f32.mrb[0].mxu0
        %v401 = vadd.f32 %v262, %v400
        %v402 = vpop.f32.mrb[0].mxu0
        %403 = vdwg.mxu0
        %v404 = vmax.f32 %v342, 0.0
        %v405 = vmax.f32 %v345, 0.0
        %v406 = vmax.f32 %v350, 0.0
        %v407 = vmax.f32 %v353, 0.0
        %v408 = vmax.f32 %v358, 0.0
        %v409 = vmax.f32 %v361, 0.0
        %v410 = vmax.f32 %v366, 0.0
        %v411 = vmax.f32 %v369, 0.0
        %v412 = vmax.f32 %v374, 0.0
        %v413 = vmax.f32 %v377, 0.0
        %v414 = vmax.f32 %v382, 0.0
        %v415 = vmax.f32 %v385, 0.0
        %v416 = vmax.f32 %v390, 0.0
        %v417 = vmax.f32 %v393, 0.0
        %v418 = vmax.f32 %v398, 0.0
        %v419 = vmax.f32 %v401, 0.0
        %v420 = vpack.c.bf16 %v405, %v404
        %v421 = vpack.c.bf16 %v407, %v406
        %v422 = vpack.c.bf16 %v409, %v408
        %v423 = vpack.c.bf16 %v411, %v410
        %v424 = vpack.c.bf16 %v413, %v412
        %v425 = vpack.c.bf16 %v415, %v414
        %v426 = vpack.c.bf16 %v417, %v416
        %v427 = vpack.c.bf16 %v419, %v418
        %v428 = vld [vmem:[%s3] sm:$0xf]
        %v429 = vld [vmem:[%s3 + $0x4] sm:$0xf]
        %v430 = vld [vmem:[%s3 + $0x8] sm:$0xf]
        %v431 = vld [vmem:[%s3 + $0xc] sm:$0xf]
        %v432 = vld [vmem:[%s3 + $0x10] sm:$0xf]
        %v433 = vld [vmem:[%s3 + $0x14] sm:$0xf]
        %v434 = vld [vmem:[%s3 + $0x18] sm:$0xf]
        %v435 = vld [vmem:[%s3 + $0x1c] sm:$0xf]
        %v436 = vld [vmem:[%s3 + $0x20] sm:$0xf]
        %v437 = vld [vmem:[%s3 + $0x24] sm:$0xf]
        %v438 = vld [vmem:[%s3 + $0x28] sm:$0xf]
        %v439 = vld [vmem:[%s3 + $0x2c] sm:$0xf]
        %v440 = vld [vmem:[%s3 + $0x30] sm:$0xf]
        %v441 = vld [vmem:[%s3 + $0x34] sm:$0xf]
        %v442 = vld [vmem:[%s3 + $0x38] sm:$0xf]
        %v443 = vld [vmem:[%s3 + $0x3c] sm:$0xf]
        %v444 = vld [vmem:[%s4] sm:$0x1]
        %v446 = vlaneseq
        %v447 = vshrl.u32 %v446, 7
        %v448 = vsub.s32 0, %v447
        %v449 = vrot.slane %v444, %v448
        %v467 = vunpack.c.l.b16 %v428
        %v468 = vunpack.c.l.b16 %v429
        %v469 = vunpack.c.l.b16 %v430
        %v470 = vunpack.c.l.b16 %v431
        %v471 = vunpack.c.l.b16 %v432
        %v472 = vunpack.c.l.b16 %v433
        %v473 = vunpack.c.l.b16 %v434
        %v474 = vunpack.c.l.b16 %v435
        %v475 = vunpack.c.l.b16 %v436
        %v476 = vunpack.c.l.b16 %v437
        %v477 = vunpack.c.l.b16 %v438
        %v478 = vunpack.c.l.b16 %v439
        %v479 = vunpack.c.l.b16 %v440
        %v480 = vunpack.c.l.b16 %v441
        %v481 = vunpack.c.l.b16 %v442
        %v482 = vunpack.c.l.b16 %v443
        %v483 = vpack.c.b16 %v468, %v467
        %v484 = vpack.c.b16 %v470, %v469
        %v485 = vpack.c.b16 %v472, %v471
        %v486 = vpack.c.b16 %v474, %v473
        %v487 = vpack.c.b16 %v476, %v475
        %v488 = vpack.c.b16 %v478, %v477
        %v489 = vpack.c.b16 %v480, %v479
        %v490 = vpack.c.b16 %v482, %v481
        %499 = vmatprep.subr.bf16.mxu0 0
        %500 = vmatpush1.bf16.msra.mxu0 %v483
        %501 = vmatprep.subr.bf16.mxu0 0
        %502 = vmatpush1.bf16.msra.mxu0 %v484
        %503 = vmatprep.subr.bf16.mxu0 0
        %504 = vmatpush1.bf16.msra.mxu0 %v485
        %505 = vmatprep.subr.bf16.mxu0 0
        %506 = vmatpush1.bf16.msra.mxu0 %v486
        %507 = vmatprep.subr.bf16.mxu0 0
        %508 = vmatpush1.bf16.msra.mxu0 %v487
        %509 = vmatprep.subr.bf16.mxu0 0
        %510 = vmatpush1.bf16.msra.mxu0 %v488
        %511 = vmatprep.subr.bf16.mxu0 0
        %512 = vmatpush1.bf16.msra.mxu0 %v489
        %513 = vmatprep.subr.bf16.mxu0 0
        %514 = vmatpush1.bf16.msra.mxu0 %v490
        %515 = vmatprep.subr.bf16.mxu0 0
        %516 = vmatpush1.bf16.msra.mxu0 0
        %517 = vmatprep.subr.bf16.mxu0 0
        %518 = vmatpush1.bf16.msra.mxu0 0
        %519 = vmatprep.subr.bf16.mxu0 0
        %520 = vmatpush1.bf16.msra.mxu0 0
        %521 = vmatprep.subr.bf16.mxu0 0
        %522 = vmatpush1.bf16.msra.mxu0 0
        %523 = vmatprep.subr.bf16.mxu0 0
        %524 = vmatpush1.bf16.msra.mxu0 0
        %525 = vmatprep.subr.bf16.mxu0 0
        %526 = vmatpush1.bf16.msra.mxu0 0
        %527 = vmatprep.subr.bf16.mxu0 0
        %528 = vmatpush1.bf16.msra.mxu0 0
        %529 = vmatprep.subr.bf16.mxu0 0
        %530 = vmatpush1.bf16.msra.mxu0 0
        %531 = vmatprep.mubr.bf16.mxu0 0
        %532 = vmatmul.mubr.bf16.gmra.mrb[0].mxu0 %v420
        %v533 = vpop.f32.mrb[0].mxu0
        %v534 = vadd.f32 %v449, %v533
        %v535 = vpop.f32.mrb[0].mxu0
        %v536 = vpop.f32.mrb[0].mxu0
        %v537 = vadd.f32 %v449, %v536
        %v538 = vpop.f32.mrb[0].mxu0
        %539 = vmatprep.mubr.bf16.mxu0 0
        %540 = vmatmul.mubr.bf16.gmra.mrb[0].mxu0 %v421
        %v541 = vpop.f32.mrb[0].mxu0
        %v542 = vadd.f32 %v449, %v541
        %v543 = vpop.f32.mrb[0].mxu0
        %v544 = vpop.f32.mrb[0].mxu0
        %v545 = vadd.f32 %v449, %v544
        %v546 = vpop.f32.mrb[0].mxu0
        %547 = vmatprep.mubr.bf16.mxu0 0
        %548 = vmatmul.mubr.bf16.gmra.mrb[0].mxu0 %v422
        %v549 = vpop.f32.mrb[0].mxu0
        %v550 = vadd.f32 %v449, %v549
        %v551 = vpop.f32.mrb[0].mxu0
        %v552 = vpop.f32.mrb[0].mxu0
        %v553 = vadd.f32 %v449, %v552
        %v554 = vpop.f32.mrb[0].mxu0
        %555 = vmatprep.mubr.bf16.mxu0 0
        %556 = vmatmul.mubr.bf16.gmra.mrb[0].mxu0 %v423
        %v557 = vpop.f32.mrb[0].mxu0
        %v558 = vadd.f32 %v449, %v557
        %v559 = vpop.f32.mrb[0].mxu0
        %v560 = vpop.f32.mrb[0].mxu0
        %v561 = vadd.f32 %v449, %v560
        %v562 = vpop.f32.mrb[0].mxu0
        %563 = vmatprep.mubr.bf16.mxu0 0
        %564 = vmatmul.mubr.bf16.gmra.mrb[0].mxu0 %v424
        %v565 = vpop.f32.mrb[0].mxu0
        %v566 = vadd.f32 %v449, %v565
        %v567 = vpop.f32.mrb[0].mxu0
        %v568 = vpop.f32.mrb[0].mxu0
        %v569 = vadd.f32 %v449, %v568
        %v570 = vpop.f32.mrb[0].mxu0
        %571 = vmatprep.mubr.bf16.mxu0 0
        %572 = vmatmul.mubr.bf16.gmra.mrb[0].mxu0 %v425
        %v573 = vpop.f32.mrb[0].mxu0
        %v574 = vadd.f32 %v449, %v573
        %v575 = vpop.f32.mrb[0].mxu0
        %v576 = vpop.f32.mrb[0].mxu0
        %v577 = vadd.f32 %v449, %v576
        %v578 = vpop.f32.mrb[0].mxu0
        %579 = vmatprep.mubr.bf16.mxu0 0
        %580 = vmatmul.mubr.bf16.gmra.mrb[0].mxu0 %v426
        %v581 = vpop.f32.mrb[0].mxu0
        %v582 = vadd.f32 %v449, %v581
        %v583 = vpop.f32.mrb[0].mxu0
        %v584 = vpop.f32.mrb[0].mxu0
        %v585 = vadd.f32 %v449, %v584
        %v586 = vpop.f32.mrb[0].mxu0
        %587 = vmatprep.mubr.bf16.mxu0 0
        %588 = vmatmul.mubr.bf16.gmra.mrb[0].mxu0 %v427
        %v589 = vpop.f32.mrb[0].mxu0
        %v590 = vadd.f32 %v449, %v589
        %v591 = vpop.f32.mrb[0].mxu0
        %v592 = vpop.f32.mrb[0].mxu0
        %v593 = vadd.f32 %v449, %v592
        %v594 = vpop.f32.mrb[0].mxu0
        %595 = vdwg.mxu0
        %v596 = vxor.u32 %v534, 2147483648
        %v597 = vxor.u32 %v537, 2147483648
        %v598 = vxor.u32 %v542, 2147483648
        %v599 = vxor.u32 %v545, 2147483648
        %v600 = vxor.u32 %v550, 2147483648
        %v601 = vxor.u32 %v553, 2147483648
        %v602 = vxor.u32 %v558, 2147483648
        %v603 = vxor.u32 %v561, 2147483648
        %v604 = vxor.u32 %v566, 2147483648
        %v605 = vxor.u32 %v569, 2147483648
        %v606 = vxor.u32 %v574, 2147483648
        %v607 = vxor.u32 %v577, 2147483648
        %v608 = vxor.u32 %v582, 2147483648
        %v609 = vxor.u32 %v585, 2147483648
        %v610 = vxor.u32 %v590, 2147483648
        %v611 = vxor.u32 %v593, 2147483648
        %v612 = vmul.f32 %v596, 1.442695
        %v613 = vpow.pop %v612
        %v614 = vmul.f32 %v597, 1.442695
        %v615 = vpow.pop %v614
        %v616 = vmul.f32 %v598, 1.442695
        %v617 = vpow.pop %v616
        %v618 = vmul.f32 %v599, 1.442695
        %v619 = vpow.pop %v618
        %v620 = vmul.f32 %v600, 1.442695
        %v621 = vpow.pop %v620
        %v622 = vmul.f32 %v601, 1.442695
        %v623 = vpow.pop %v622
        %v624 = vmul.f32 %v602, 1.442695
        %v625 = vpow.pop %v624
        %v626 = vmul.f32 %v603, 1.442695
        %v627 = vpow.pop %v626
        %v628 = vmul.f32 %v604, 1.442695
        %v629 = vpow.pop %v628
        %v630 = vmul.f32 %v605, 1.442695
        %v631 = vpow.pop %v630
        %v632 = vmul.f32 %v606, 1.442695
        %v633 = vpow.pop %v632
        %v634 = vmul.f32 %v607, 1.442695
        %v635 = vpow.pop %v634
        %v636 = vmul.f32 %v608, 1.442695
        %v637 = vpow.pop %v636
        %v638 = vmul.f32 %v609, 1.442695
        %v639 = vpow.pop %v638
        %v640 = vmul.f32 %v610, 1.442695
        %v641 = vpow.pop %v640
        %v642 = vmul.f32 %v611, 1.442695
        %v643 = vpow.pop %v642
        %v644 = vadd.f32 %v613, 1.0
        %v645 = vadd.f32 %v615, 1.0
        %v646 = vadd.f32 %v617, 1.0
        %v647 = vadd.f32 %v619, 1.0
        %v648 = vadd.f32 %v621, 1.0
        %v649 = vadd.f32 %v623, 1.0
        %v650 = vadd.f32 %v625, 1.0
        %v651 = vadd.f32 %v627, 1.0
        %v652 = vadd.f32 %v629, 1.0
        %v653 = vadd.f32 %v631, 1.0
        %v654 = vadd.f32 %v633, 1.0
        %v655 = vadd.f32 %v635, 1.0
        %v656 = vadd.f32 %v637, 1.0
        %v657 = vadd.f32 %v639, 1.0
        %v658 = vadd.f32 %v641, 1.0
        %v659 = vadd.f32 %v643, 1.0
        %v660 = vrcp.pop %v644
        %v661 = vmul.f32 1.0, %v660
        %v662 = vrcp.pop %v645
        %v663 = vmul.f32 1.0, %v662
        %v664 = vrcp.pop %v646
        %v665 = vmul.f32 1.0, %v664
        %v666 = vrcp.pop %v647
        %v667 = vmul.f32 1.0, %v666
        %v668 = vrcp.pop %v648
        %v669 = vmul.f32 1.0, %v668
        %v670 = vrcp.pop %v649
        %v671 = vmul.f32 1.0, %v670
        %v672 = vrcp.pop %v650
        %v673 = vmul.f32 1.0, %v672
        %v674 = vrcp.pop %v651
        %v675 = vmul.f32 1.0, %v674
        %v676 = vrcp.pop %v652
        %v677 = vmul.f32 1.0, %v676
        %v678 = vrcp.pop %v653
        %v679 = vmul.f32 1.0, %v678
        %v680 = vrcp.pop %v654
        %v681 = vmul.f32 1.0, %v680
        %v682 = vrcp.pop %v655
        %v683 = vmul.f32 1.0, %v682
        %v684 = vrcp.pop %v656
        %v685 = vmul.f32 1.0, %v684
        %v686 = vrcp.pop %v657
        %v687 = vmul.f32 1.0, %v686
        %v688 = vrcp.pop %v658
        %v689 = vmul.f32 1.0, %v688
        %v690 = vrcp.pop %v659
        %v691 = vmul.f32 1.0, %v690
        %v692 = vmul.f32 %v661, 2.0
        %v693 = vmul.f32 %v663, 2.0
        %v694 = vmul.f32 %v665, 2.0
        %v695 = vmul.f32 %v667, 2.0
        %v696 = vmul.f32 %v669, 2.0
        %v697 = vmul.f32 %v671, 2.0
        %v698 = vmul.f32 %v673, 2.0
        %v699 = vmul.f32 %v675, 2.0
        %v700 = vmul.f32 %v677, 2.0
        %v701 = vmul.f32 %v679, 2.0
        %v702 = vmul.f32 %v681, 2.0
        %v703 = vmul.f32 %v683, 2.0
        %v704 = vmul.f32 %v685, 2.0
        %v705 = vmul.f32 %v687, 2.0
        %v706 = vmul.f32 %v689, 2.0
        %v707 = vmul.f32 %v691, 2.0
        %708 = vst [vmem:[%s218] sm:$0xff] %v692
        %709 = vst [vmem:[%s218 + $0x8] sm:$0xff] %v693
        %710 = vst [vmem:[%s218 + $0x10] sm:$0xff] %v694
        %711 = vst [vmem:[%s218 + $0x18] sm:$0xff] %v695
        %712 = vst [vmem:[%s218 + $0x20] sm:$0xff] %v696
        %713 = vst [vmem:[%s218 + $0x28] sm:$0xff] %v697
        %714 = vst [vmem:[%s218 + $0x30] sm:$0xff] %v698
        %715 = vst [vmem:[%s218 + $0x38] sm:$0xff] %v699
        %716 = vst [vmem:[%s218 + $0x40] sm:$0xff] %v700
        %717 = vst [vmem:[%s218 + $0x48] sm:$0xff] %v701
        %718 = vst [vmem:[%s218 + $0x50] sm:$0xff] %v702
        %719 = vst [vmem:[%s218 + $0x58] sm:$0xff] %v703
        %720 = vst [vmem:[%s218 + $0x60] sm:$0xff] %v704
        %721 = vst [vmem:[%s218 + $0x68] sm:$0xff] %v705
        %722 = vst [vmem:[%s218 + $0x70] sm:$0xff] %v706
        %723 = vst [vmem:[%s218 + $0x78] sm:$0xff] %v707
        %s724 = sand.u32 %s137, 1
        %s725 = scalar_lea.sflag [#allocation3], %s724
        %s726 = sand.u32 %s137, 1
        %s727 = smul.addr %s726, 128
        %s728 = scalar_lea.vmem [#allocation2], %s727
        // Predicated region
        $region41: #{tpu_custom_call.1} parent=39 // pred_check
          %p729 = pneg %p147
        $region42: #{tpu_custom_call.1} parent=39 // pred_check_branch
          %731 = sbr.rel (%p729) target = $region44
        $region43: #{tpu_custom_call.1} parent=39 // pred_region
          %s732 = smul.u32 16, %s19
          %s734 = ssub.s32 2048, 2048
          %735 = vsyncadd %s725, %s734
          %s736 = smul.addr %s732, 128
          %s737 = scalar_lea.hbm %s5, %s736
          %s738 = sshll.u32 %s728, 4
          %s739 = int_to_ptr.vmem [resolvable:$true] %s738
          %744 = dma.vmem_to_hbm [thread:$0]  %s739, 2048, %s737, %s725, 128, 128, 8
        $region44: #{tpu_custom_call.1} parent=39 // pred_fallthru
          _
      $region40: #{tpu_custom_call.1} parent=5 // pred_fallthru
        _
      %p745 = scmp.le.s32.totalorder 2, %s14
      // Predicated region
      $region45: #{tpu_custom_call.1} parent=5 // pred_check
        %p746 = pneg %p745
      $region46: #{tpu_custom_call.1} parent=5 // pred_check_branch
        %748 = sbr.rel (%p746) target = $region48
      $region47: #{tpu_custom_call.1} parent=5 // pred_region
        %s749 = ssub.s32 %s14, 2
        // Predicated region
        $region49: #{tpu_custom_call.1} parent=47 // pred_check
          %p750 = pneg %p153
        $region50: #{tpu_custom_call.1} parent=47 // pred_check_branch
          %752 = sbr.rel (%p750) target = $region52
        $region51: #{tpu_custom_call.1} parent=47 // pred_region
          %s753 = sand.u32 %s138, 1
          %s754 = scalar_lea.sflag [#allocation3], %s753
          %s755 = sand.u32 %s138, 1
          %s756 = smul.addr %s755, 128
          %s757 = scalar_lea.vmem [#allocation2], %s756
          %758 = dma.done %s754, 2048
        $region52: #{tpu_custom_call.1} parent=47 // pred_fallthru
          _
      $region48: #{tpu_custom_call.1} parent=5 // pred_fallthru
        _
    $region6: #{tpu_custom_call.1} parent=1 // loop_footer
      %s18 = sadd.s32 1, %s14
    $region7: #{tpu_custom_call.1} parent=1 // loop_footer_branch
      %13 = sbr.rel target = $region3
    $region8: #{tpu_custom_call.1} parent=1 // loop_exit
      _
    %759 = vsyncpa [#allocation3], 1
    %s760 = scalar_lea.sflag [#allocation3], 1
    %761 = vsyncpa %s760, 1

// kernel: tpu_custom_call.1
$region0: #{tpu_custom_call.1}
  #allocation0 [shape = 'u32[]', space=smem, size = 0x4, offset = 0x4, fixed_abs, tag = 'smem constant byte address 0x4 - core index']
  #allocation1 [shape = 'u32[144,128]{1,0:T(1,128)}', space=vmem, size = 0x12000, scoped, tag = 'internal scratch']
  %s0 = inlined_call_operand.vmem [shape: f32[256,48], index: 0, kind: input, shape index: {}]
  %s1 = inlined_call_operand.vmem [shape: bf16[48,128], index: 1, kind: input, shape index: {}]
  %s2 = inlined_call_operand.vmem [shape: f32[1,128], index: 2, kind: input, shape index: {}]
  %s3 = inlined_call_operand.vmem [shape: bf16[128,128], index: 3, kind: input, shape index: {}]
  %s4 = inlined_call_operand.vmem [shape: f32[1,128], index: 4, kind: input, shape index: {}]
  %s5 = inlined_call_operand.hbm [shape: f32[256,128], index: 5, kind: output, shape index: {}]
  %s6 = sld [smem:[#allocation0]]
  $region53: #{tpu_custom_call.1} parent=0
    _
  %s8 = ssub.s32 1, %s6
  %s9 = scalar_select 0, %s8, %s6
  $region1: #{tpu_custom_call.1} parent=0
    #allocation2 [shape = 'u8[131072]{0}', space=vmem, size = 0x20000, scoped, tag = 'output window, operand 0']
    #allocation3 [shape = 's32[2]{0}', space=sflag, size = 0x8, scoped, tag = 'scoped memory for tpu_custom_call.1']
    %10 = vsyncpa [#allocation3], 0
    %s11 = scalar_lea.sflag [#allocation3], 1
    %12 = vsyncpa %s11, 0
    loop: start=0, step=1, limit=4
    $region2: #{tpu_custom_call.1} parent=1 // loop_pre_header
      _
    $region3: #{tpu_custom_call.1} parent=1 // loop_header
      %s14 = sphi 0, %s18
      %p15 = scmp.ge.s32.totalorder %s14, 4
      %s24 = sphi 0, %s26
      %s27 = sphi 0, %s24
      %s28 = sphi 0, %s27
      %s44 = sphi 0, %s28
      %s48 = sphi 0, %s48
      %s50 = sphi 0, %s48
      %s51 = sphi 0, %s50
      %s65 = sphi 0, %s51
      %s69 = sphi 0, %s69
      %s71 = sphi 0, %s69
      %s72 = sphi 0, %s71
      %s86 = sphi 0, %s72
      %s90 = sphi 0, %s90
      %s92 = sphi 0, %s90
      %s93 = sphi 0, %s92
      %s107 = sphi 0, %s93
      %s111 = sphi 0, %s111
      %s113 = sphi 0, %s111
      %s114 = sphi 0, %s113
      %s128 = sphi 0, %s114
      %s134 = sphi 0, %s136
      %s137 = sphi 0, %s134
      %s138 = sphi 0, %s137
      %s154 = sphi 0, %s138
    $region4: #{tpu_custom_call.1} parent=1 // loop_header_branch
      %17 = sbr.rel (%p15) target = $region8
    $region5: #{tpu_custom_call.1} parent=1 // loop_body
      %s19 = ssub.s32 %s14, 1
      %s20 = ssub.s32 %s14, 2
      %s21 = sadd.s32 %s14, 1
      %s22 = ssub.s32 %s14, %s21
      %p23 = scmp.eq.s32.totalorder %s22, 0
      %s25 = sadd.s32 %s24, 1
      %s26 = scalar_select %p23, %s24, %s25
      %p29 = pneg %p23
      %p30 = scmp.eq.s32.totalorder %s14, 1
      %p31 = por %p29, %p30
      %p32 = scmp.ne.s32.totalorder %s24, %s27
      %p33 = scmp.eq.s32.totalorder %s14, 0
      %p34 = por %p32, %p33
      %p35 = scmp.ne.s32.totalorder %s24, %s27
      %p36 = scmp.eq.s32.totalorder %s19, 1
      %p37 = por %p35, %p36
      %p38 = scmp.ne.s32.totalorder %s27, %s28
      %p39 = scmp.eq.s32.totalorder %s19, 0
      %p40 = por %p38, %p39
      %p41 = scmp.ne.s32.totalorder %s27, %s28
      %p42 = scmp.eq.s32.totalorder %s20, 1
      %p43 = por %p41, %p42
      %p45 = scmp.ne.s32.totalorder %s28, %s44
      %p46 = scmp.eq.s32.totalorder %s20, 0
      %p47 = por %p45, %p46
      %s49 = sadd.s32 %s48, 1
      %p52 = scmp.eq.s32.totalorder %s14, 1
      %p53 = scmp.ne.s32.totalorder %s48, %s50
      %p54 = scmp.eq.s32.totalorder %s14, 0
      %p55 = por %p53, %p54
      %p56 = scmp.ne.s32.totalorder %s48, %s50
      %p57 = scmp.eq.s32.totalorder %s19, 1
      %p58 = por %p56, %p57
      %p59 = scmp.ne.s32.totalorder %s50, %s51
      %p60 = scmp.eq.s32.totalorder %s19, 0
      %p61 = por %p59, %p60
      %p62 = scmp.ne.s32.totalorder %s50, %s51
      %p63 = scmp.eq.s32.totalorder %s20, 1
      %p64 = por %p62, %p63
      %p66 = scmp.ne.s32.totalorder %s51, %s65
      %p67 = scmp.eq.s32.totalorder %s20, 0
      %p68 = por %p66, %p67
      %s70 = sadd.s32 %s69, 1
      %p73 = scmp.eq.s32.totalorder %s14, 1
      %p74 = scmp.ne.s32.totalorder %s69, %s71
      %p75 = scmp.eq.s32.totalorder %s14, 0
      %p76 = por %p74, %p75
      %p77 = scmp.ne.s32.totalorder %s69, %s71
      %p78 = scmp.eq.s32.totalorder %s19, 1
      %p79 = por %p77, %p78
      %p80 = scmp.ne.s32.totalorder %s71, %s72
      %p81 = scmp.eq.s32.totalorder %s19, 0
      %p82 = por %p80, %p81
      %p83 = scmp.ne.s32.totalorder %s71, %s72
      %p84 = scmp.eq.s32.totalorder %s20, 1
      %p85 = por %p83, %p84
      %p87 = scmp.ne.s32.totalorder %s72, %s86
      %p88 = scmp.eq.s32.totalorder %s20, 0
      %p89 = por %p87, %p88
      %s91 = sadd.s32 %s90, 1
      %p94 = scmp.eq.s32.totalorder %s14, 1
      %p95 = scmp.ne.s32.totalorder %s90, %s92
      %p96 = scmp.eq.s32.totalorder %s14, 0
      %p97 = por %p95, %p96
      %p98 = scmp.ne.s32.totalorder %s90, %s92
      %p99 = scmp.eq.s32.totalorder %s19, 1
      %p100 = por %p98, %p99
      %p101 = scmp.ne.s32.totalorder %s92, %s93
      %p102 = scmp.eq.s32.totalorder %s19, 0
      %p103 = por %p101, %p102
      %p104 = scmp.ne.s32.totalorder %s92, %s93
      %p105 = scmp.eq.s32.totalorder %s20, 1
      %p106 = por %p104, %p105
      %p108 = scmp.ne.s32.totalorder %s93, %s107
      %p109 = scmp.eq.s32.totalorder %s20, 0
      %p110 = por %p108, %p109
      %s112 = sadd.s32 %s111, 1
      %p115 = scmp.eq.s32.totalorder %s14, 1
      %p116 = scmp.ne.s32.totalorder %s111, %s113
      %p117 = scmp.eq.s32.totalorder %s14, 0
      %p118 = por %p116, %p117
      %p119 = scmp.ne.s32.totalorder %s111, %s113
      %p120 = scmp.eq.s32.totalorder %s19, 1
      %p121 = por %p119, %p120
      %p122 = scmp.ne.s32.totalorder %s113, %s114
      %p123 = scmp.eq.s32.totalorder %s19, 0
      %p124 = por %p122, %p123
      %p125 = scmp.ne.s32.totalorder %s113, %s114
      %p126 = scmp.eq.s32.totalorder %s20, 1
      %p127 = por %p125, %p126
      %p129 = scmp.ne.s32.totalorder %s114, %s128
      %p130 = scmp.eq.s32.totalorder %s20, 0
      %p131 = por %p129, %p130
      %s132 = ssub.s32 %s14, %s21
      %p133 = scmp.eq.s32.totalorder %s132, 0
      %s135 = sadd.s32 %s134, 1
      %s136 = scalar_select %p133, %s134, %s135
      %p139 = pneg %p133
      %p140 = scmp.eq.s32.totalorder %s14, 1
      %p141 = por %p139, %p140
      %p142 = scmp.ne.s32.totalorder %s134, %s137
      %p143 = scmp.eq.s32.totalorder %s14, 0
      %p144 = por %p142, %p143
      %p145 = scmp.ne.s32.totalorder %s134, %s137
      %p146 = scmp.eq.s32.totalorder %s19, 1
      %p147 = por %p145, %p146
      %p148 = scmp.ne.s32.totalorder %s137, %s138
      %p149 = scmp.eq.s32.totalorder %s19, 0
      %p150 = por %p148, %p149
      %p151 = scmp.ne.s32.totalorder %s137, %s138
      %p152 = scmp.eq.s32.totalorder %s20, 1
      %p153 = por %p151, %p152
      %p155 = scmp.ne.s32.totalorder %s138, %s154
      %p156 = scmp.eq.s32.totalorder %s20, 0
      %p157 = por %p155, %p156
      %p158 = scmp.le.s32.totalorder 1, %s14
      %p159 = scmp.lt.s32.totalorder %s14, 3
      %p160 = pnand %p158, %p159
      %p161 = pneg %p160
      // Predicated region
      $region9: #{tpu_custom_call.1} parent=5 // pred_check
        _
      $region10: #{tpu_custom_call.1} parent=5 // pred_check_branch
        %163 = sbr.rel (%p160) target = $region12
      $region11: #{tpu_custom_call.1} parent=5 // pred_region
        %s164 = ssub.s32 %s14, 1
        // Predicated region
        $region13: #{tpu_custom_call.1} parent=11 // pred_check
          %p165 = pneg %p61
        $region14: #{tpu_custom_call.1} parent=11 // pred_check_branch
          %167 = sbr.rel (%p165) target = $region16
        $region15: #{tpu_custom_call.1} parent=11 // pred_region
          _
        $region16: #{tpu_custom_call.1} parent=11 // pred_fallthru
          _
        // Predicated region
        $region17: #{tpu_custom_call.1} parent=11 // pred_check
          %p168 = pneg %p82
        $region18: #{tpu_custom_call.1} parent=11 // pred_check_branch
          %170 = sbr.rel (%p168) target = $region20
        $region19: #{tpu_custom_call.1} parent=11 // pred_region
          _
        $region20: #{tpu_custom_call.1} parent=11 // pred_fallthru
          _
        // Predicated region
        $region21: #{tpu_custom_call.1} parent=11 // pred_check
          %p171 = pneg %p103
        $region22: #{tpu_custom_call.1} parent=11 // pred_check_branch
          %173 = sbr.rel (%p171) target = $region24
        $region23: #{tpu_custom_call.1} parent=11 // pred_region
          _
        $region24: #{tpu_custom_call.1} parent=11 // pred_fallthru
          _
        // Predicated region
        $region25: #{tpu_custom_call.1} parent=11 // pred_check
          %p174 = pneg %p124
        $region26: #{tpu_custom_call.1} parent=11 // pred_check_branch
          %176 = sbr.rel (%p174) target = $region28
        $region27: #{tpu_custom_call.1} parent=11 // pred_region
          _
        $region28: #{tpu_custom_call.1} parent=11 // pred_fallthru
          _
      $region12: #{tpu_custom_call.1} parent=5 // pred_fallthru
        _
      %p177 = scmp.lt.s32.totalorder %s14, 2
      // Predicated region
      $region29: #{tpu_custom_call.1} parent=5 // pred_check
        %p178 = pneg %p177
      $region30: #{tpu_custom_call.1} parent=5 // pred_check_branch
        %180 = sbr.rel (%p178) target = $region32
      $region31: #{tpu_custom_call.1} parent=5 // pred_region
        // Predicated region
        $region33: #{tpu_custom_call.1} parent=31 // pred_check
          %p181 = pneg %p34
        $region34: #{tpu_custom_call.1} parent=31 // pred_check_branch
          %183 = sbr.rel (%p181) target = $region36
        $region35: #{tpu_custom_call.1} parent=31 // pred_region
          %s184 = smul.u32 16, %s14
          %p185 = scmp.lt.s32.totalorder %s184, 31
          %s186 = scalar_select %p185, %s184, 31
          %s187 = smul.addr %s186, 8
          %s188 = scalar_lea.vmem %s0, %s187
          %s189 = smul.u32 16, %s14
        $region36: #{tpu_custom_call.1} parent=31 // pred_fallthru
          _
      $region32: #{tpu_custom_call.1} parent=5 // pred_fallthru
        _
      %p190 = scmp.le.s32.totalorder 1, %s14
      %p191 = scmp.lt.s32.totalorder %s14, 3
      %p192 = pnand %p190, %p191
      %p193 = pneg %p192
      // Predicated region
      $region37: #{tpu_custom_call.1} parent=5 // pred_check
        _
      $region38: #{tpu_custom_call.1} parent=5 // pred_check_branch
        %195 = sbr.rel (%p192) target = $region40
      $region39: #{tpu_custom_call.1} parent=5 // pred_region
        %s196 = ssub.s32 %s14, 1
        %s197 = smul.u32 16, %s19
        %p198 = scmp.lt.s32.totalorder %s197, 31
        %s199 = scalar_select %p198, %s197, 31
        %s200 = smul.addr %s199, 8
        %s201 = scalar_lea.vmem %s0, %s200
        %p202 = pneg %p40
        %p203 = pneg %p37
        %p204 = pneg %p61
        %p205 = pneg %p58
        %p206 = pneg %p82
        %p207 = pneg %p79
        %p208 = pneg %p103
        %p209 = pneg %p100
        %p210 = pneg %p124
        %p211 = pneg %p121
        %p212 = pneg %p150
        %p213 = pneg %p147
        %s214 = sand.u32 %s137, 1
        %s215 = scalar_lea.sflag [#allocation3], %s214
        %s216 = sand.u32 %s137, 1
        %s217 = smul.addr %s216, 128
        %s218 = scalar_lea.vmem [#allocation2], %s217
        %s219 = smul.u32 16, %s19
        %p220 = scmp.lt.s32.totalorder %s219, 31
        %s221 = scalar_select %p220, %s219, 31
        %s222 = smul.addr %s221, 8
        %s223 = scalar_lea.vmem %s0, %s222
        %s224 = smul.u32 16, %s19
        %s225 = smul.u32 16, %s19
        %v227 = vld [vmem:[%s223] sm:$0xff]
        %v228 = vld [vmem:[%s223 + $0x8] sm:$0xff]
        %v229 = vld [vmem:[%s223 + $0x10] sm:$0xff]
        %v230 = vld [vmem:[%s223 + $0x18] sm:$0xff]
        %v231 = vld [vmem:[%s223 + $0x20] sm:$0xff]
        %v232 = vld [vmem:[%s223 + $0x28] sm:$0xff]
        %v233 = vld [vmem:[%s223 + $0x30] sm:$0xff]
        %v234 = vld [vmem:[%s223 + $0x38] sm:$0xff]
        %v235 = vld [vmem:[%s223 + $0x40] sm:$0xff]
        %v236 = vld [vmem:[%s223 + $0x48] sm:$0xff]
        %v237 = vld [vmem:[%s223 + $0x50] sm:$0xff]
        %v238 = vld [vmem:[%s223 + $0x58] sm:$0xff]
        %v239 = vld [vmem:[%s223 + $0x60] sm:$0xff]
        %v240 = vld [vmem:[%s223 + $0x68] sm:$0xff]
        %v241 = vld [vmem:[%s223 + $0x70] sm:$0xff]
        %v242 = vld [vmem:[%s223 + $0x78] sm:$0xff]
        %v243 = vpack.c.bf16 %v228, %v227
        %v244 = vpack.c.bf16 %v230, %v229
        %v245 = vpack.c.bf16 %v232, %v231
        %v246 = vpack.c.bf16 %v234, %v233
        %v247 = vpack.c.bf16 %v236, %v235
        %v248 = vpack.c.bf16 %v238, %v237
        %v249 = vpack.c.bf16 %v240, %v239
        %v250 = vpack.c.bf16 %v242, %v241
        %v251 = vld [vmem:[%s1] sm:$0xf]
        %v252 = vld [vmem:[%s1 + $0x4] sm:$0xf]
        %v253 = vld [vmem:[%s1 + $0x8] sm:$0xf]
        %v254 = vld [vmem:[%s1 + $0xc] sm:$0xf]
        %v255 = vld [vmem:[%s1 + $0x10] sm:$0xf]
        %v256 = vld [vmem:[%s1 + $0x14] sm:$0xf]
        %v257 = vld [vmem:[%s2] sm:$0x1]
        %v259 = vlaneseq
        %v260 = vshrl.u32 %v259, 7
        %v261 = vsub.s32 0, %v260
        %v262 = vrot.slane %v257, %v261
        %v270 = vunpack.c.l.b16 %v251
        %v271 = vunpack.c.l.b16 %v252
        %v272 = vunpack.c.l.b16 %v253
        %v273 = vunpack.c.l.b16 %v254
        %v274 = vunpack.c.l.b16 %v255
        %v275 = vunpack.c.l.b16 %v256
        %v276 = vpack.c.b16 %v271, %v270
        %v277 = vpack.c.b16 %v273, %v272
        %v278 = vpack.c.b16 %v275, %v274
        %vm282 = vcmask 392192
        %v284 = vsel %vm282, %v243, 0
        %v287 = vsel %vm282, %v244, 0
        %v290 = vsel %vm282, %v245, 0
        %v293 = vsel %vm282, %v246, 0
        %v296 = vsel %vm282, %v247, 0
        %v299 = vsel %vm282, %v248, 0
        %v302 = vsel %vm282, %v249, 0
        %v305 = vsel %vm282, %v250, 0
        %307 = vmatprep.subr.bf16.mxu0 0
        %308 = vmatpush1.bf16.msra.mxu0 %v276
        %309 = vmatprep.subr.bf16.mxu0 0
        %310 = vmatpush1.bf16.msra.mxu0 %v277
        %311 = vmatprep.subr.bf16.mxu0 0
        %312 = vmatpush1.bf16.msra.mxu0 %v278
        %313 = vmatprep.subr.bf16.mxu0 0
        %314 = vmatpush1.bf16.msra.mxu0 0
        %315 = vmatprep.subr.bf16.mxu0 0
        %316 = vmatpush1.bf16.msra.mxu0 0
        %317 = vmatprep.subr.bf16.mxu0 0
        %318 = vmatpush1.bf16.msra.mxu0 0
        %319 = vmatprep.subr.bf16.mxu0 0
        %320 = vmatpush1.bf16.msra.mxu0 0
        %321 = vmatprep.subr.bf16.mxu0 0
        %322 = vmatpush1.bf16.msra.mxu0 0
        %323 = vmatprep.subr.bf16.mxu0 0
        %324 = vmatpush1.bf16.msra.mxu0 0
        %325 = vmatprep.subr.bf16.mxu0 0
        %326 = vmatpush1.bf16.msra.mxu0 0
        %327 = vmatprep.subr.bf16.mxu0 0
        %328 = vmatpush1.bf16.msra.mxu0 0
        %329 = vmatprep.subr.bf16.mxu0 0
        %330 = vmatpush1.bf16.msra.mxu0 0
        %331 = vmatprep.subr.bf16.mxu0 0
        %332 = vmatpush1.bf16.msra.mxu0 0
        %333 = vmatprep.subr.bf16.mxu0 0
        %334 = vmatpush1.bf16.msra.mxu0 0
        %335 = vmatprep.subr.bf16.mxu0 0
        %336 = vmatpush1.bf16.msra.mxu0 0
        %337 = vmatprep.subr.bf16.mxu0 0
        %338 = vmatpush1.bf16.msra.mxu0 0
        %339 = vmatprep.mubr.bf16.mxu0 0
        %340 = vmatmul.mubr.bf16.gmra.mrb[0].mxu0 %v284
        %v341 = vpop.f32.mrb[0].mxu0
        %v342 = vadd.f32 %v262, %v341
        %v343 = vpop.f32.mrb[0].mxu0
        %v344 = vpop.f32.mrb[0].mxu0
        %v345 = vadd.f32 %v262, %v344
        %v346 = vpop.f32.mrb[0].mxu0
        %347 = vmatprep.mubr.bf16.mxu0 0
        %348 = vmatmul.mubr.bf16.gmra.mrb[0].mxu0 %v287
        %v349 = vpop.f32.mrb[0].mxu0
        %v350 = vadd.f32 %v262, %v349
        %v351 = vpop.f32.mrb[0].mxu0
        %v352 = vpop.f32.mrb[0].mxu0
        %v353 = vadd.f32 %v262, %v352
        %v354 = vpop.f32.mrb[0].mxu0
        %355 = vmatprep.mubr.bf16.mxu0 0
        %356 = vmatmul.mubr.bf16.gmra.mrb[0].mxu0 %v290
        %v357 = vpop.f32.mrb[0].mxu0
        %v358 = vadd.f32 %v262, %v357
        %v359 = vpop.f32.mrb[0].mxu0
        %v360 = vpop.f32.mrb[0].mxu0
        %v361 = vadd.f32 %v262, %v360
        %v362 = vpop.f32.mrb[0].mxu0
        %363 = vmatprep.mubr.bf16.mxu0 0
        %364 = vmatmul.mubr.bf16.gmra.mrb[0].mxu0 %v293
        %v365 = vpop.f32.mrb[0].mxu0
        %v366 = vadd.f32 %v262, %v365
        %v367 = vpop.f32.mrb[0].mxu0
        %v368 = vpop.f32.mrb[0].mxu0
        %v369 = vadd.f32 %v262, %v368
        %v370 = vpop.f32.mrb[0].mxu0
        %371 = vmatprep.mubr.bf16.mxu0 0
        %372 = vmatmul.mubr.bf16.gmra.mrb[0].mxu0 %v296
        %v373 = vpop.f32.mrb[0].mxu0
        %v374 = vadd.f32 %v262, %v373
        %v375 = vpop.f32.mrb[0].mxu0
        %v376 = vpop.f32.mrb[0].mxu0
        %v377 = vadd.f32 %v262, %v376
        %v378 = vpop.f32.mrb[0].mxu0
        %379 = vmatprep.mubr.bf16.mxu0 0
        %380 = vmatmul.mubr.bf16.gmra.mrb[0].mxu0 %v299
        %v381 = vpop.f32.mrb[0].mxu0
        %v382 = vadd.f32 %v262, %v381
        %v383 = vpop.f32.mrb[0].mxu0
        %v384 = vpop.f32.mrb[0].mxu0
        %v385 = vadd.f32 %v262, %v384
        %v386 = vpop.f32.mrb[0].mxu0
        %387 = vmatprep.mubr.bf16.mxu0 0
        %388 = vmatmul.mubr.bf16.gmra.mrb[0].mxu0 %v302
        %v389 = vpop.f32.mrb[0].mxu0
        %v390 = vadd.f32 %v262, %v389
        %v391 = vpop.f32.mrb[0].mxu0
        %v392 = vpop.f32.mrb[0].mxu0
        %v393 = vadd.f32 %v262, %v392
        %v394 = vpop.f32.mrb[0].mxu0
        %395 = vmatprep.mubr.bf16.mxu0 0
        %396 = vmatmul.mubr.bf16.gmra.mrb[0].mxu0 %v305
        %v397 = vpop.f32.mrb[0].mxu0
        %v398 = vadd.f32 %v262, %v397
        %v399 = vpop.f32.mrb[0].mxu0
        %v400 = vpop.f32.mrb[0].mxu0
        %v401 = vadd.f32 %v262, %v400
        %v402 = vpop.f32.mrb[0].mxu0
        %403 = vdwg.mxu0
        %v404 = vmax.f32 %v342, 0.0
        %v405 = vmax.f32 %v345, 0.0
        %v406 = vmax.f32 %v350, 0.0
        %v407 = vmax.f32 %v353, 0.0
        %v408 = vmax.f32 %v358, 0.0
        %v409 = vmax.f32 %v361, 0.0
        %v410 = vmax.f32 %v366, 0.0
        %v411 = vmax.f32 %v369, 0.0
        %v412 = vmax.f32 %v374, 0.0
        %v413 = vmax.f32 %v377, 0.0
        %v414 = vmax.f32 %v382, 0.0
        %v415 = vmax.f32 %v385, 0.0
        %v416 = vmax.f32 %v390, 0.0
        %v417 = vmax.f32 %v393, 0.0
        %v418 = vmax.f32 %v398, 0.0
        %v419 = vmax.f32 %v401, 0.0
        %v420 = vpack.c.bf16 %v405, %v404
        %v421 = vpack.c.bf16 %v407, %v406
        %v422 = vpack.c.bf16 %v409, %v408
        %v423 = vpack.c.bf16 %v411, %v410
        %v424 = vpack.c.bf16 %v413, %v412
        %v425 = vpack.c.bf16 %v415, %v414
        %v426 = vpack.c.bf16 %v417, %v416
        %v427 = vpack.c.bf16 %v419, %v418
        %v428 = vld [vmem:[%s3] sm:$0xf]
        %v429 = vld [vmem:[%s3 + $0x4] sm:$0xf]
        %v430 = vld [vmem:[%s3 + $0x8] sm:$0xf]
        %v431 = vld [vmem:[%s3 + $0xc] sm:$0xf]
        %v432 = vld [vmem:[%s3 + $0x10] sm:$0xf]
        %v433 = vld [vmem:[%s3 + $0x14] sm:$0xf]
        %v434 = vld [vmem:[%s3 + $0x18] sm:$0xf]
        %v435 = vld [vmem:[%s3 + $0x1c] sm:$0xf]
        %v436 = vld [vmem:[%s3 + $0x20] sm:$0xf]
        %v437 = vld [vmem:[%s3 + $0x24] sm:$0xf]
        %v438 = vld [vmem:[%s3 + $0x28] sm:$0xf]
        %v439 = vld [vmem:[%s3 + $0x2c] sm:$0xf]
        %v440 = vld [vmem:[%s3 + $0x30] sm:$0xf]
        %v441 = vld [vmem:[%s3 + $0x34] sm:$0xf]
        %v442 = vld [vmem:[%s3 + $0x38] sm:$0xf]
        %v443 = vld [vmem:[%s3 + $0x3c] sm:$0xf]
        %v444 = vld [vmem:[%s4] sm:$0x1]
        %v446 = vlaneseq
        %v447 = vshrl.u32 %v446, 7
        %v448 = vsub.s32 0, %v447
        %v449 = vrot.slane %v444, %v448
        %v467 = vunpack.c.l.b16 %v428
        %v468 = vunpack.c.l.b16 %v429
        %v469 = vunpack.c.l.b16 %v430
        %v470 = vunpack.c.l.b16 %v431
        %v471 = vunpack.c.l.b16 %v432
        %v472 = vunpack.c.l.b16 %v433
        %v473 = vunpack.c.l.b16 %v434
        %v474 = vunpack.c.l.b16 %v435
        %v475 = vunpack.c.l.b16 %v436
        %v476 = vunpack.c.l.b16 %v437
        %v477 = vunpack.c.l.b16 %v438
        %v478 = vunpack.c.l.b16 %v439
        %v479 = vunpack.c.l.b16 %v440
        %v480 = vunpack.c.l.b16 %v441
        %v481 = vunpack.c.l.b16 %v442
        %v482 = vunpack.c.l.b16 %v443
        %v483 = vpack.c.b16 %v468, %v467
        %v484 = vpack.c.b16 %v470, %v469
        %v485 = vpack.c.b16 %v472, %v471
        %v486 = vpack.c.b16 %v474, %v473
        %v487 = vpack.c.b16 %v476, %v475
        %v488 = vpack.c.b16 %v478, %v477
        %v489 = vpack.c.b16 %v480, %v479
        %v490 = vpack.c.b16 %v482, %v481
        %499 = vmatprep.subr.bf16.mxu0 0
        %500 = vmatpush1.bf16.msra.mxu0 %v483
        %501 = vmatprep.subr.bf16.mxu0 0
        %502 = vmatpush1.bf16.msra.mxu0 %v484
        %503 = vmatprep.subr.bf16.mxu0 0
        %504 = vmatpush1.bf16.msra.mxu0 %v485
        %505 = vmatprep.subr.bf16.mxu0 0
        %506 = vmatpush1.bf16.msra.mxu0 %v486
        %507 = vmatprep.subr.bf16.mxu0 0
        %508 = vmatpush1.bf16.msra.mxu0 %v487
        %509 = vmatprep.subr.bf16.mxu0 0
        %510 = vmatpush1.bf16.msra.mxu0 %v488
        %511 = vmatprep.subr.bf16.mxu0 0
        %512 = vmatpush1.bf16.msra.mxu0 %v489
        %513 = vmatprep.subr.bf16.mxu0 0
        %514 = vmatpush1.bf16.msra.mxu0 %v490
        %515 = vmatprep.subr.bf16.mxu0 0
        %516 = vmatpush1.bf16.msra.mxu0 0
        %517 = vmatprep.subr.bf16.mxu0 0
        %518 = vmatpush1.bf16.msra.mxu0 0
        %519 = vmatprep.subr.bf16.mxu0 0
        %520 = vmatpush1.bf16.msra.mxu0 0
        %521 = vmatprep.subr.bf16.mxu0 0
        %522 = vmatpush1.bf16.msra.mxu0 0
        %523 = vmatprep.subr.bf16.mxu0 0
        %524 = vmatpush1.bf16.msra.mxu0 0
        %525 = vmatprep.subr.bf16.mxu0 0
        %526 = vmatpush1.bf16.msra.mxu0 0
        %527 = vmatprep.subr.bf16.mxu0 0
        %528 = vmatpush1.bf16.msra.mxu0 0
        %529 = vmatprep.subr.bf16.mxu0 0
        %530 = vmatpush1.bf16.msra.mxu0 0
        %531 = vmatprep.mubr.bf16.mxu0 0
        %532 = vmatmul.mubr.bf16.gmra.mrb[0].mxu0 %v420
        %v533 = vpop.f32.mrb[0].mxu0
        %v534 = vadd.f32 %v449, %v533
        %v535 = vpop.f32.mrb[0].mxu0
        %v536 = vpop.f32.mrb[0].mxu0
        %v537 = vadd.f32 %v449, %v536
        %v538 = vpop.f32.mrb[0].mxu0
        %539 = vmatprep.mubr.bf16.mxu0 0
        %540 = vmatmul.mubr.bf16.gmra.mrb[0].mxu0 %v421
        %v541 = vpop.f32.mrb[0].mxu0
        %v542 = vadd.f32 %v449, %v541
        %v543 = vpop.f32.mrb[0].mxu0
        %v544 = vpop.f32.mrb[0].mxu0
        %v545 = vadd.f32 %v449, %v544
        %v546 = vpop.f32.mrb[0].mxu0
        %547 = vmatprep.mubr.bf16.mxu0 0
        %548 = vmatmul.mubr.bf16.gmra.mrb[0].mxu0 %v422
        %v549 = vpop.f32.mrb[0].mxu0
        %v550 = vadd.f32 %v449, %v549
        %v551 = vpop.f32.mrb[0].mxu0
        %v552 = vpop.f32.mrb[0].mxu0
        %v553 = vadd.f32 %v449, %v552
        %v554 = vpop.f32.mrb[0].mxu0
        %555 = vmatprep.mubr.bf16.mxu0 0
        %556 = vmatmul.mubr.bf16.gmra.mrb[0].mxu0 %v423
        %v557 = vpop.f32.mrb[0].mxu0
        %v558 = vadd.f32 %v449, %v557
        %v559 = vpop.f32.mrb[0].mxu0
        %v560 = vpop.f32.mrb[0].mxu0
        %v561 = vadd.f32 %v449, %v560
        %v562 = vpop.f32.mrb[0].mxu0
        %563 = vmatprep.mubr.bf16.mxu0 0
        %564 = vmatmul.mubr.bf16.gmra.mrb[0].mxu0 %v424
        %v565 = vpop.f32.mrb[0].mxu0
        %v566 = vadd.f32 %v449, %v565
        %v567 = vpop.f32.mrb[0].mxu0
        %v568 = vpop.f32.mrb[0].mxu0
        %v569 = vadd.f32 %v449, %v568
        %v570 = vpop.f32.mrb[0].mxu0
        %571 = vmatprep.mubr.bf16.mxu0 0
        %572 = vmatmul.mubr.bf16.gmra.mrb[0].mxu0 %v425
        %v573 = vpop.f32.mrb[0].mxu0
        %v574 = vadd.f32 %v449, %v573
        %v575 = vpop.f32.mrb[0].mxu0
        %v576 = vpop.f32.mrb[0].mxu0
        %v577 = vadd.f32 %v449, %v576
        %v578 = vpop.f32.mrb[0].mxu0
        %579 = vmatprep.mubr.bf16.mxu0 0
        %580 = vmatmul.mubr.bf16.gmra.mrb[0].mxu0 %v426
        %v581 = vpop.f32.mrb[0].mxu0
        %v582 = vadd.f32 %v449, %v581
        %v583 = vpop.f32.mrb[0].mxu0
        %v584 = vpop.f32.mrb[0].mxu0
        %v585 = vadd.f32 %v449, %v584
        %v586 = vpop.f32.mrb[0].mxu0
        %587 = vmatprep.mubr.bf16.mxu0 0
        %588 = vmatmul.mubr.bf16.gmra.mrb[0].mxu0 %v427
        %v589 = vpop.f32.mrb[0].mxu0
        %v590 = vadd.f32 %v449, %v589
        %v591 = vpop.f32.mrb[0].mxu0
        %v592 = vpop.f32.mrb[0].mxu0
        %v593 = vadd.f32 %v449, %v592
        %v594 = vpop.f32.mrb[0].mxu0
        %595 = vdwg.mxu0
        %v596 = vxor.u32 %v534, 2147483648
        %v597 = vxor.u32 %v537, 2147483648
        %v598 = vxor.u32 %v542, 2147483648
        %v599 = vxor.u32 %v545, 2147483648
        %v600 = vxor.u32 %v550, 2147483648
        %v601 = vxor.u32 %v553, 2147483648
        %v602 = vxor.u32 %v558, 2147483648
        %v603 = vxor.u32 %v561, 2147483648
        %v604 = vxor.u32 %v566, 2147483648
        %v605 = vxor.u32 %v569, 2147483648
        %v606 = vxor.u32 %v574, 2147483648
        %v607 = vxor.u32 %v577, 2147483648
        %v608 = vxor.u32 %v582, 2147483648
        %v609 = vxor.u32 %v585, 2147483648
        %v610 = vxor.u32 %v590, 2147483648
        %v611 = vxor.u32 %v593, 2147483648
        %v612 = vmul.f32 %v596, 1.442695
        %v613 = vpow.pop %v612
        %v614 = vmul.f32 %v597, 1.442695
        %v615 = vpow.pop %v614
        %v616 = vmul.f32 %v598, 1.442695
        %v617 = vpow.pop %v616
        %v618 = vmul.f32 %v599, 1.442695
        %v619 = vpow.pop %v618
        %v620 = vmul.f32 %v600, 1.442695
        %v621 = vpow.pop %v620
        %v622 = vmul.f32 %v601, 1.442695
        %v623 = vpow.pop %v622
        %v624 = vmul.f32 %v602, 1.442695
        %v625 = vpow.pop %v624
        %v626 = vmul.f32 %v603, 1.442695
        %v627 = vpow.pop %v626
        %v628 = vmul.f32 %v604, 1.442695
        %v629 = vpow.pop %v628
        %v630 = vmul.f32 %v605, 1.442695
        %v631 = vpow.pop %v630
        %v632 = vmul.f32 %v606, 1.442695
        %v633 = vpow.pop %v632
        %v634 = vmul.f32 %v607, 1.442695
        %v635 = vpow.pop %v634
        %v636 = vmul.f32 %v608, 1.442695
        %v637 = vpow.pop %v636
        %v638 = vmul.f32 %v609, 1.442695
        %v639 = vpow.pop %v638
        %v640 = vmul.f32 %v610, 1.442695
        %v641 = vpow.pop %v640
        %v642 = vmul.f32 %v611, 1.442695
        %v643 = vpow.pop %v642
        %v644 = vadd.f32 %v613, 1.0
        %v645 = vadd.f32 %v615, 1.0
        %v646 = vadd.f32 %v617, 1.0
        %v647 = vadd.f32 %v619, 1.0
        %v648 = vadd.f32 %v621, 1.0
        %v649 = vadd.f32 %v623, 1.0
        %v650 = vadd.f32 %v625, 1.0
        %v651 = vadd.f32 %v627, 1.0
        %v652 = vadd.f32 %v629, 1.0
        %v653 = vadd.f32 %v631, 1.0
        %v654 = vadd.f32 %v633, 1.0
        %v655 = vadd.f32 %v635, 1.0
        %v656 = vadd.f32 %v637, 1.0
        %v657 = vadd.f32 %v639, 1.0
        %v658 = vadd.f32 %v641, 1.0
        %v659 = vadd.f32 %v643, 1.0
        %v660 = vrcp.pop %v644
        %v661 = vmul.f32 1.0, %v660
        %v662 = vrcp.pop %v645
        %v663 = vmul.f32 1.0, %v662
        %v664 = vrcp.pop %v646
        %v665 = vmul.f32 1.0, %v664
        %v666 = vrcp.pop %v647
        %v667 = vmul.f32 1.0, %v666
        %v668 = vrcp.pop %v648
        %v669 = vmul.f32 1.0, %v668
        %v670 = vrcp.pop %v649
        %v671 = vmul.f32 1.0, %v670
        %v672 = vrcp.pop %v650
        %v673 = vmul.f32 1.0, %v672
        %v674 = vrcp.pop %v651
        %v675 = vmul.f32 1.0, %v674
        %v676 = vrcp.pop %v652
        %v677 = vmul.f32 1.0, %v676
        %v678 = vrcp.pop %v653
        %v679 = vmul.f32 1.0, %v678
        %v680 = vrcp.pop %v654
        %v681 = vmul.f32 1.0, %v680
        %v682 = vrcp.pop %v655
        %v683 = vmul.f32 1.0, %v682
        %v684 = vrcp.pop %v656
        %v685 = vmul.f32 1.0, %v684
        %v686 = vrcp.pop %v657
        %v687 = vmul.f32 1.0, %v686
        %v688 = vrcp.pop %v658
        %v689 = vmul.f32 1.0, %v688
        %v690 = vrcp.pop %v659
        %v691 = vmul.f32 1.0, %v690
        %v692 = vmul.f32 %v661, 2.0
        %v693 = vmul.f32 %v663, 2.0
        %v694 = vmul.f32 %v665, 2.0
        %v695 = vmul.f32 %v667, 2.0
        %v696 = vmul.f32 %v669, 2.0
        %v697 = vmul.f32 %v671, 2.0
        %v698 = vmul.f32 %v673, 2.0
        %v699 = vmul.f32 %v675, 2.0
        %v700 = vmul.f32 %v677, 2.0
        %v701 = vmul.f32 %v679, 2.0
        %v702 = vmul.f32 %v681, 2.0
        %v703 = vmul.f32 %v683, 2.0
        %v704 = vmul.f32 %v685, 2.0
        %v705 = vmul.f32 %v687, 2.0
        %v706 = vmul.f32 %v689, 2.0
        %v707 = vmul.f32 %v691, 2.0
        %708 = vst [vmem:[%s218] sm:$0xff] %v692
        %709 = vst [vmem:[%s218 + $0x8] sm:$0xff] %v693
        %710 = vst [vmem:[%s218 + $0x10] sm:$0xff] %v694
        %711 = vst [vmem:[%s218 + $0x18] sm:$0xff] %v695
        %712 = vst [vmem:[%s218 + $0x20] sm:$0xff] %v696
        %713 = vst [vmem:[%s218 + $0x28] sm:$0xff] %v697
        %714 = vst [vmem:[%s218 + $0x30] sm:$0xff] %v698
        %715 = vst [vmem:[%s218 + $0x38] sm:$0xff] %v699
        %716 = vst [vmem:[%s218 + $0x40] sm:$0xff] %v700
        %717 = vst [vmem:[%s218 + $0x48] sm:$0xff] %v701
        %718 = vst [vmem:[%s218 + $0x50] sm:$0xff] %v702
        %719 = vst [vmem:[%s218 + $0x58] sm:$0xff] %v703
        %720 = vst [vmem:[%s218 + $0x60] sm:$0xff] %v704
        %721 = vst [vmem:[%s218 + $0x68] sm:$0xff] %v705
        %722 = vst [vmem:[%s218 + $0x70] sm:$0xff] %v706
        %723 = vst [vmem:[%s218 + $0x78] sm:$0xff] %v707
        %s724 = sand.u32 %s137, 1
        %s725 = scalar_lea.sflag [#allocation3], %s724
        %s726 = sand.u32 %s137, 1
        %s727 = smul.addr %s726, 128
        %s728 = scalar_lea.vmem [#allocation2], %s727
        // Predicated region
        $region41: #{tpu_custom_call.1} parent=39 // pred_check
          %p729 = pneg %p147
        $region42: #{tpu_custom_call.1} parent=39 // pred_check_branch
          %731 = sbr.rel (%p729) target = $region44
        $region43: #{tpu_custom_call.1} parent=39 // pred_region
          %s732 = smul.u32 16, %s19
          %s734 = ssub.s32 2048, 2048
          %735 = vsyncadd %s725, %s734
          %s736 = smul.addr %s732, 128
          %s737 = scalar_lea.hbm %s5, %s736
          %s738 = sshll.u32 %s728, 4
          %s739 = int_to_ptr.vmem [resolvable:$true] %s738
          %744 = dma.vmem_to_hbm [thread:$0]  %s739, 2048, %s737, %s725, 128, 128, 8
        $region44: #{tpu_custom_call.1} parent=39 // pred_fallthru
          _
      $region40: #{tpu_custom_call.1} parent=5 // pred_fallthru
        _
      %p745 = scmp.le.s32.totalorder 2, %s14
      // Predicated region
      $region45: #{tpu_custom_call.1} parent=5 // pred_check
        %p746 = pneg %p745
      $region46: #{tpu_custom_call.1} parent=5 // pred_check_branch
        %748 = sbr.rel (%p746) target = $region48
      $region47: #{tpu_custom_call.1} parent=5 // pred_region
        %s749 = ssub.s32 %s14, 2
        // Predicated region
        $region49: #{tpu_custom_call.1} parent=47 // pred_check
          %p750 = pneg %p153
        $region50: #{tpu_custom_call.1} parent=47 // pred_check_branch
          %752 = sbr.rel (%p750) target = $region52
        $region51: #{tpu_custom_call.1} parent=47 // pred_region
          %s753 = sand.u32 %s138, 1
          %s754 = scalar_lea.sflag [#allocation3], %s753
          %s755 = sand.u32 %s138, 1
          %s756 = smul.addr %s755, 128
          %s757 = scalar_lea.vmem [#allocation2], %s756
          %758 = dma.done %s754, 2048
        $region52: #{tpu_custom_call.1} parent=47 // pred_fallthru
          _
      $region48: #{tpu_custom_call.1} parent=5 // pred_fallthru
        _
    $region6: #{tpu_custom_call.1} parent=1 // loop_footer
      %s18 = sadd.s32 1, %s14
    $region7: #{tpu_custom_call.1} parent=1 // loop_footer_branch
      %13 = sbr.rel target = $region3
    $region8: #{tpu_custom_call.1} parent=1 // loop_exit
      _
    %759 = vsyncpa [#allocation3], 1
    %s760 = scalar_lea.sflag [#allocation3], 1
    %761 = vsyncpa %s760, 1

</llo_original>
